<compile_context>
chip_gen: v7x
topology: tpu7x:2x2x1
jax: 0.10.0
libtpu: 0.0.40
codegen_flags: <defaults>
</compile_context>

<pallas_src>
import functools

import jax
import jax.numpy as jnp
from jax.experimental import pallas as pl
from jax.experimental.pallas import tpu as pltpu


# ----------------------------------------------------------------------------
# helpers
# ----------------------------------------------------------------------------
def _round_up(x, m):
    return ((x + m - 1) // m) * m


def _pick_tile(dim, candidates):
    for c in candidates:
        if c <= dim and dim % c == 0:
            return c
    return dim


def _pick_tm(m, cap=1024):
    """Largest multiple-of-8 tile <= cap that divides (8-padded) m."""
    mp = _round_up(max(m, 8), 8)
    best = 8
    for t in range(8, min(cap, mp) + 1, 8):
        if mp % t == 0:
            best = t
    return best, mp


# ----------------------------------------------------------------------------
# Pallas kernel: per-phase tiled matmul + bias (P1 + P3 accumulator pattern)
# ----------------------------------------------------------------------------
def _phase_matmul_kernel(tk, p_ref, w_ref, b_ref, o_ref, acc_ref):
    k = pl.program_id(2)

    @pl.when(k == 0)
    def _():
        acc_ref[...] = jnp.zeros_like(acc_ref)

    # Weight block is the full (Kp, Coutp) per-phase matrix, VMEM-resident;
    # slice the current contraction chunk in-kernel (aligned dynamic start).
    k0 = pl.multiple_of(k * tk, tk)
    acc_ref[...] += jnp.dot(p_ref[...], w_ref[pl.ds(k0, tk), :],
                            preferred_element_type=jnp.float32)

    @pl.when(k == pl.num_programs(2) - 1)
    def _():
        # Bias is added exactly once, on the final K step.
        o_ref[...] = (acc_ref[...] + b_ref[...]).astype(o_ref.dtype)


def _phase_matmul(patches, w_folded, bias_row, *, tm, tk, out_dtype):
    p, mp, kp = patches.shape
    _, _, coutp = w_folded.shape
    grid = (p, mp // tm, kp // tk)

    cost = pl.CostEstimate(
        flops=2 * p * mp * kp * coutp,
        transcendentals=0,
        # Honest traffic: patches stream once, weight fetched once per phase,
        # output written once.
        bytes_accessed=(patches.size * patches.dtype.itemsize
                        + w_folded.size * w_folded.dtype.itemsize
                        + bias_row.size * bias_row.dtype.itemsize
                        + p * mp * coutp * jnp.dtype(out_dtype).itemsize),
    )

    # Actual per-step VMEM footprint (double-buffered operands + accumulator);
    # set the scoped-VMEM budget from it so it is valid on v5e/v6e (128 MiB)
    # and v7x (64 MiB) alike.
    footprint = (2 * tm * tk * patches.dtype.itemsize            # patch tiles
                 + 2 * kp * coutp * w_folded.dtype.itemsize      # resident W
                 + 2 * tm * coutp * jnp.dtype(out_dtype).itemsize  # out tiles
                 + tm * coutp * 4                                # f32 acc
                 + 2 * coutp * 4)                                # bias
    vmem_limit = max(int(footprint * 1.5) + (2 << 20), 16 << 20)
    vmem_limit = min(vmem_limit, 56 << 20)

    return pl.pallas_call(
        functools.partial(_phase_matmul_kernel, tk),
        out_shape=jax.ShapeDtypeStruct((p, mp, coutp), out_dtype),
        grid_spec=pltpu.PrefetchScalarGridSpec(
            num_scalar_prefetch=0,
            grid=grid,
            in_specs=[
                # Patch tile: streamed exactly once (no Cout grid axis).
                pl.BlockSpec((None, tm, tk), lambda p, i, k: (p, i, k)),
                # Folded weight: one VMEM-resident block per phase (block
                # index constant across i and k -> DMA'd once per phase).
                pl.BlockSpec((None, kp, coutp), lambda p, i, k: (p, 0, 0)),
                # Bias row, resident.
                pl.BlockSpec((1, coutp), lambda p, i, k: (0, 0)),
            ],
            out_specs=pl.BlockSpec((None, tm, coutp), lambda p, i, k: (p, i, 0)),
            scratch_shapes=[pltpu.VMEM((tm, coutp), jnp.float32)],
        ),
        compiler_params=pltpu.CompilerParams(
            dimension_semantics=("parallel", "parallel", "arbitrary"),
            vmem_limit_bytes=vmem_limit,
        ),
        cost_estimate=cost,
    )(patches, w_folded, bias_row)


# ----------------------------------------------------------------------------
# phase (subpixel) decomposition glue
# ----------------------------------------------------------------------------
_PHASE_FOLD = (
    ((1.0, 0.0, 0.0), (0.0, 1.0, 1.0)),   # output phase 0: taps at {-1, 0}
    ((1.0, 1.0, 0.0), (0.0, 0.0, 1.0)),   # output phase 1: taps at { 0,+1}
)


def _fold_weights(weight):
    """OIHW 3x3 weight -> (4, 4*Cin, Cout) folded weights, one per phase."""
    cout, cin, _, _ = weight.shape
    a = jnp.asarray(_PHASE_FOLD, dtype=jnp.float32)                    # (2,2,3)
    w_hwio = jnp.transpose(weight, (2, 3, 1, 0)).astype(jnp.float32)   # (3,3,ci,co)
    wf = jnp.einsum("pak,qbl,klio->pqabio", a, a, w_hwio)              # (2,2,2,2,ci,co)
    return wf.reshape(4, 4 * cin, cout)


def _phase_patches(x_nhwc):
    """bf16 NHWC input -> (4, N*H*W, 4*C) per-phase 2x2 im2col patches."""
    n, h, w, c = x_nhwc.shape
    x_pad = jnp.pad(x_nhwc, ((0, 0), (1, 1), (1, 1), (0, 0)))
    phases = []
    for pi in range(2):
        for pj in range(2):
            taps = [x_pad[:, pi + dh:pi + dh + h, pj + dw:pj + dw + w, :]
                    for dh in range(2) for dw in range(2)]
            pats = jnp.stack(taps, axis=3)             # (N, H, W, 4, C)
            phases.append(pats.reshape(n * h * w, 4 * c))
    return jnp.stack(phases, axis=0)                   # (4, M, 4C)


# ----------------------------------------------------------------------------
# UpSampleBlock forward
# ----------------------------------------------------------------------------
@functools.partial(jax.jit, static_argnames=("out_dtype",))
def upsample_block(x_nchw, weight, bias, *, out_dtype=jnp.float32):
    """UpSampleBlock forward: nearest-2x upsample + 3x3 SAME conv.

    x_nchw: (N, C, H, W);  weight: (Cout, C, 3, 3) OIHW;  bias: (Cout,)
    returns (N, Cout, 2H, 2W) in out_dtype (f32 default, matching PyTorch).
    """
    n, c, h, w = x_nchw.shape
    cout = weight.shape[0]
    m = n * h * w
    k = 4 * c

    # --- glue: early bf16 cast, then small per-phase 2x2 im2col -------------
    x_nhwc = jnp.transpose(x_nchw, (0, 2, 3, 1)).astype(jnp.bfloat16)
    patches = _phase_patches(x_nhwc)                    # (4, M, 4C)  bf16
    w_folded = _fold_weights(weight)                    # (4, 4C, Cout) f32

    # --- MXU / lane-friendly padding and tile selection ----------------------
    kp = 128 if k <= 128 else _round_up(k, 256)   # 256-aligned contraction
    coutp = _round_up(cout, 128)                  # lane-dense output, tn==coutp
    tk = _pick_tile(kp, (512, 256, 128))
    tm, mp = _pick_tm(m, cap=1024)
    # NOTE: folded weight (Kp x Coutp bf16, x2 buffers) is fully VMEM-resident
    # per phase; for taming-transformer channel counts (<=512) that is <=4 MiB.
    # A Cout grid axis would only be needed for Cout >> 1024.

    if (mp, kp) != (m, k):
        patches = jnp.pad(patches, ((0, 0), (0, mp - m), (0, kp - k)))
    w_p = jnp.pad(w_folded,
                  ((0, 0), (0, kp - k), (0, coutp - cout))).astype(jnp.bfloat16)
    bias_p = jnp.pad(bias, (0, coutp - cout)).reshape(1, coutp).astype(jnp.float32)

    out_p = _phase_matmul(patches, w_p, bias_p, tm=tm, tk=tk, out_dtype=out_dtype)

    # --- interleave the 4 output phases back into (N, Cout, 2H, 2W) ---------
    out4 = out_p[:, :m, :cout].reshape(2, 2, n, h, w, cout)   # (pi,pj,n,i,j,co)
    out = jnp.transpose(out4, (2, 5, 3, 0, 4, 1)).reshape(n, cout, 2 * h, 2 * w)
    # TODO(synk): if the surrounding model consumes NHWC/bf16, skip this NCHW
    # transpose and pass out_dtype=jnp.bfloat16 to halve output store traffic.
    return out


# ----------------------------------------------------------------------------
# Test
# ----------------------------------------------------------------------------
if __name__ == "__main__":
    key = jax.random.PRNGKey(0)
    k_x, k_w, k_b = jax.random.split(key, 3)

    N, C, H, W = 2, 4, 16, 16
    x = jax.random.normal(k_x, (N, C, H, W), dtype=jnp.float32)

    # Deterministic synthetic Conv2d(C, C, 3, 1, 1) parameters.
    fan_in = C * 3 * 3
    bound = float(1.0 / (fan_in ** 0.5))
    weight = jax.random.uniform(k_w, (C, C, 3, 3), jnp.float32, -bound, bound)
    bias = jax.random.uniform(k_b, (C,), jnp.float32, -bound, bound)

    out = upsample_block(x, weight, bias)
    out = jax.block_until_ready(out)
    assert out.shape == (N, C, 2 * H, 2 * W), out.shape

    # Reference: nearest-2x upsample + SAME 3x3 conv in f32 (module semantics).
    x_up = jnp.repeat(jnp.repeat(x, 2, axis=2), 2, axis=3)
    ref = jax.lax.conv_general_dilated(
        x_up, weight, window_strides=(1, 1), padding=((1, 1), (1, 1)),
        dimension_numbers=("NCHW", "OIHW", "NCHW"),
        precision=jax.lax.Precision.HIGHEST,
    ) + bias.reshape(1, C, 1, 1)

    err = float(jnp.max(jnp.abs(out - ref)))
    # Operands are bf16-rounded (f32 accumulation) -> small quantization error.
    assert jnp.allclose(out, ref, atol=5e-2, rtol=5e-2), err

    print("KERNEL_OK")
</pallas_src>

<mosaic_0001>
module attributes {stable_mosaic.version = 11 : i64} {
  func.func @_phase_matmul_kernel(%arg0: i32, %arg1: i32, %arg2: i32, %arg3: memref<1x512x128xbf16, #tpu.memory_space<vmem>>, %arg4: memref<1x128x128xbf16, #tpu.memory_space<vmem>>, %arg5: memref<1x128xf32, #tpu.memory_space<vmem>>, %arg6: memref<1x512x128xf32, #tpu.memory_space<vmem>>, %arg7: memref<512x128xf32, #tpu.memory_space<vmem>>) attributes {dimension_semantics = [#tpu.dimension_semantics<parallel>, #tpu.dimension_semantics<parallel>, #tpu.dimension_semantics<arbitrary>], iteration_bounds = array<i64: 4, 1, 1>, scalar_prefetch = 0 : i64, scratch_operands = 1 : i64, tpu.core_type = #tpu.core_type<tc>, window_params = [{transform_indices = @transform_0, window_bounds = array<i64: 1, 512, 128>}, {transform_indices = @transform_1, window_bounds = array<i64: 1, 128, 128>}, {pipeline_mode = #tpu.pipeline_mode<synchronous>, transform_indices = @transform_2, window_bounds = array<i64: 1, 128>}, {transform_indices = @transform_3, window_bounds = array<i64: 1, 512, 128>}]} {
    %c0_i32 = arith.constant 0 : i32
    %0 = arith.cmpi eq, %arg2, %c0_i32 : i32
    %1 = arith.extui %0 : i1 to i32
    %c0_i32_0 = arith.constant 0 : i32
    %2 = arith.cmpi ne, %1, %c0_i32_0 : i32
    scf.if %2 {
      %cst_11 = arith.constant 0.000000e+00 : f32
      %17 = vector.broadcast %cst_11 : f32 to vector<512x128xf32>
      %c0_12 = arith.constant 0 : index
      %c0_13 = arith.constant 0 : index
      %18 = vector.load %arg7[%c0_12, %c0_13] : memref<512x128xf32, #tpu.memory_space<vmem>>, vector<512x128xf32>
      tpu.vector_store %arg7[%c0_12, %c0_13], %17 {strides = array<i32>} : memref<512x128xf32, #tpu.memory_space<vmem>>, vector<512x128xf32>,
    } else {
    }
    %c128_i32 = arith.constant 128 : i32
    %3 = arith.muli %arg2, %c128_i32 : i32
    %4 = tpu.assume_multiple %3, 128 : i32
    %c0 = arith.constant 0 : index
    %c0_1 = arith.constant 0 : index
    %5 = vector.load %arg7[%c0, %c0_1] : memref<512x128xf32, #tpu.memory_space<vmem>>, vector<512x128xf32>
    %c0_2 = arith.constant 0 : index
    %c0_3 = arith.constant 0 : index
    %c0_4 = arith.constant 0 : index
    %6 = vector.load %arg3[%c0_2, %c0_3, %c0_4] : memref<1x512x128xbf16, #tpu.memory_space<vmem>>, vector<1x512x128xbf16>
    %7 = vector.shape_cast %6 : vector<1x512x128xbf16> to vector<512x128xbf16>
    %c0_5 = arith.constant 0 : index
    %8 = arith.index_cast %4 : i32 to index
    %c0_6 = arith.constant 0 : index
    %9 = vector.load %arg4[%c0_5, %8, %c0_6] : memref<1x128x128xbf16, #tpu.memory_space<vmem>>, vector<1x128x128xbf16>
    %10 = vector.shape_cast %9 : vector<1x128x128xbf16> to vector<128x128xbf16>
    %cst = arith.constant dense<0.000000e+00> : vector<512x128xf32>
    %11 = tpu.matmul %7, %10, %cst {dimension_numbers = #tpu.dot_dimension_numbers<[1], [0], [0], [1], [0, 0, 1, 1], [], []>} : vector<512x128xbf16>, vector<128x128xbf16>, vector<512x128xf32> -> vector<512x128xf32>
    %12 = arith.addf %5, %11 : vector<512x128xf32>
    %c0_7 = arith.constant 0 : index
    %c0_8 = arith.constant 0 : index
    %13 = vector.load %arg7[%c0_7, %c0_8] : memref<512x128xf32, #tpu.memory_space<vmem>>, vector<512x128xf32>
    tpu.vector_store %arg7[%c0_7, %c0_8], %12 {strides = array<i32>} : memref<512x128xf32, #tpu.memory_space<vmem>>, vector<512x128xf32>,
    %c0_i32_9 = arith.constant 0 : i32
    %14 = arith.cmpi eq, %arg2, %c0_i32_9 : i32
    %15 = arith.extui %14 : i1 to i32
    %c0_i32_10 = arith.constant 0 : i32
    %16 = arith.cmpi ne, %15, %c0_i32_10 : i32
    scf.if %16 {
      %c0_11 = arith.constant 0 : index
      %c0_12 = arith.constant 0 : index
      %17 = vector.load %arg7[%c0_11, %c0_12] : memref<512x128xf32, #tpu.memory_space<vmem>>, vector<512x128xf32>
      %c0_13 = arith.constant 0 : index
      %c0_14 = arith.constant 0 : index
      %18 = vector.load %arg5[%c0_13, %c0_14] : memref<1x128xf32, #tpu.memory_space<vmem>>, vector<1x128xf32>
      %19 = vector.broadcast %18 : vector<1x128xf32> to vector<512x128xf32>
      %20 = arith.addf %17, %19 : vector<512x128xf32>
      %c0_15 = arith.constant 0 : index
      %c0_16 = arith.constant 0 : index
      %c0_17 = arith.constant 0 : index
      %21 = vector.load %arg6[%c0_15, %c0_16, %c0_17] : memref<1x512x128xf32, #tpu.memory_space<vmem>>, vector<1x512x128xf32>
      %22 = vector.shape_cast %21 : vector<1x512x128xf32> to vector<512x128xf32>
      %23 = vector.shape_cast %20 : vector<512x128xf32> to vector<1x512x128xf32>
      tpu.vector_store %arg6[%c0_15, %c0_16, %c0_17], %23 {strides = array<i32>} : memref<1x512x128xf32, #tpu.memory_space<vmem>>, vector<1x512x128xf32>,
    } else {
    }
    return
  }
  func.func @transform_0(%arg0: i32, %arg1: i32, %arg2: i32) -> (i32, i32, i32) {
    %c0_i32 = arith.constant 0 : i32
    return %arg0, %arg1, %arg2 : i32, i32, i32
  }
  func.func @transform_1(%arg0: i32, %arg1: i32, %arg2: i32) -> (i32, i32, i32) {
    %c0_i32 = arith.constant 0 : i32
    %c0_i32_0 = arith.constant 0 : i32
    %c0_i32_1 = arith.constant 0 : i32
    return %arg0, %c0_i32, %c0_i32_0 : i32, i32, i32
  }
  func.func @transform_2(%arg0: i32, %arg1: i32, %arg2: i32) -> (i32, i32) {
    %c0_i32 = arith.constant 0 : i32
    %c0_i32_0 = arith.constant 0 : i32
    %c0_i32_1 = arith.constant 0 : i32
    return %c0_i32, %c0_i32_0 : i32, i32
  }
  func.func @transform_3(%arg0: i32, %arg1: i32, %arg2: i32) -> (i32, i32, i32) {
    %c0_i32 = arith.constant 0 : i32
    %c0_i32_0 = arith.constant 0 : i32
    return %arg0, %arg1, %c0_i32 : i32, i32, i32
  }
}

</mosaic_0001>

<llo_original>
// kernel: upsample_block.1
$region0: #{upsample_block.1}
  #allocation0 [shape = 'u32[]', space=smem, size = 0x4, offset = 0x4, fixed_abs, tag = 'smem constant byte address 0x4 - core index']
  #allocation1 [shape = 'u32[144,128]{1,0:T(1,128)}', space=vmem, size = 0x12000, scoped, tag = 'internal scratch']
  #allocation2 [shape = 'f32[512,128]{1,0:T(8,128)}', space=vmem, size = 0x40000, scoped, tag = 'scratch operand']
  %s0 = inlined_call_operand.vmem [shape: bf16[4,512,128], index: 0, kind: input, shape index: {}]
  %s1 = inlined_call_operand.vmem [shape: bf16[4,128,128], index: 1, kind: input, shape index: {}]
  %s2 = inlined_call_operand.vmem [shape: f32[1,128], index: 2, kind: input, shape index: {}]
  %s3 = inlined_call_operand.vmem [shape: f32[4,512,128], index: 3, kind: output, shape index: {}]
  %s4 = sld [smem:[#allocation0]]
  $region53: #{upsample_block.1} parent=0
    _
  %s6 = ssub.s32 1, %s4
  %s7 = scalar_select 0, %s6, %s4
  loop: start=0, step=1, limit=6
  $region2: #{upsample_block.1} parent=0 // loop_pre_header
    _
  $region3: #{upsample_block.1} parent=0 // loop_header
    %s9 = sphi 0, %s13
    %p10 = scmp.ge.s32.totalorder %s9, 6
    %s16 = sphi 0, %s35
    %s17 = sphi 0, %s31
    %s18 = sphi 0, %s27
    %s19 = sphi 0, %s16
    %s20 = sphi 0, %s17
    %s21 = sphi 0, %s18
    %s22 = sphi 0, %s19
    %s23 = sphi 0, %s20
    %s24 = sphi 0, %s21
    %s42 = sphi 0, %s44
    %s45 = sphi 0, %s42
    %s46 = sphi 0, %s45
    %s62 = sphi 0, %s46
    %s68 = sphi 0, %s70
    %s71 = sphi 0, %s68
    %s72 = sphi 0, %s71
    %s88 = sphi 0, %s72
    %s92 = sphi 0, %s92
    %s94 = sphi 0, %s92
    %s95 = sphi 0, %s94
    %s109 = sphi 0, %s95
    %s117 = sphi 0, %s119
    %s120 = sphi 0, %s117
    %s121 = sphi 0, %s120
    %s137 = sphi 0, %s121
  $region4: #{upsample_block.1} parent=0 // loop_header_branch
    %12 = sbr.rel (%p10) target = $region8
  $region5: #{upsample_block.1} parent=0 // loop_body
    %s14 = ssub.s32 %s9, 1
    %s15 = ssub.s32 %s9, 2
    %s25 = sadd.s32 1, %s18
    %p26 = scmp.ge.s32.totalorder %s25, 1
    %s27 = scalar_select %p26, 0, %s25
    %s28 = sadd.s32 1, %s17
    %s29 = scalar_select %p26, %s28, %s17
    %p30 = scmp.ge.s32.totalorder %s29, 1
    %s31 = scalar_select %p30, 0, %s29
    %s32 = sadd.s32 1, %s16
    %s33 = scalar_select %p30, %s32, %s16
    %p34 = scmp.ge.s32.totalorder %s33, 4
    %s35 = scalar_select %p34, 0, %s33
    %s36 = ssub.s32 %s16, %s35
    %s37 = ssub.s32 %s17, %s31
    %s38 = sor.u32 %s36, %s37
    %s39 = ssub.s32 %s18, %s27
    %s40 = sor.u32 %s38, %s39
    %p41 = scmp.eq.s32.totalorder %s40, 0
    %s43 = sadd.s32 %s42, 1
    %s44 = scalar_select %p41, %s42, %s43
    %p47 = pneg %p41
    %p48 = scmp.eq.s32.totalorder %s9, 3
    %p49 = por %p47, %p48
    %p50 = scmp.ne.s32.totalorder %s42, %s45
    %p51 = scmp.eq.s32.totalorder %s9, 0
    %p52 = por %p50, %p51
    %p53 = scmp.ne.s32.totalorder %s42, %s45
    %p54 = scmp.eq.s32.totalorder %s14, 3
    %p55 = por %p53, %p54
    %p56 = scmp.ne.s32.totalorder %s45, %s46
    %p57 = scmp.eq.s32.totalorder %s14, 0
    %p58 = por %p56, %p57
    %p59 = scmp.ne.s32.totalorder %s45, %s46
    %p60 = scmp.eq.s32.totalorder %s15, 3
    %p61 = por %p59, %p60
    %p63 = scmp.ne.s32.totalorder %s46, %s62
    %p64 = scmp.eq.s32.totalorder %s15, 0
    %p65 = por %p63, %p64
    %s66 = ssub.s32 %s16, %s35
    %p67 = scmp.eq.s32.totalorder %s66, 0
    %s69 = sadd.s32 %s68, 1
    %s70 = scalar_select %p67, %s68, %s69
    %p73 = pneg %p67
    %p74 = scmp.eq.s32.totalorder %s9, 3
    %p75 = por %p73, %p74
    %p76 = scmp.ne.s32.totalorder %s68, %s71
    %p77 = scmp.eq.s32.totalorder %s9, 0
    %p78 = por %p76, %p77
    %p79 = scmp.ne.s32.totalorder %s68, %s71
    %p80 = scmp.eq.s32.totalorder %s14, 3
    %p81 = por %p79, %p80
    %p82 = scmp.ne.s32.totalorder %s71, %s72
    %p83 = scmp.eq.s32.totalorder %s14, 0
    %p84 = por %p82, %p83
    %p85 = scmp.ne.s32.totalorder %s71, %s72
    %p86 = scmp.eq.s32.totalorder %s15, 3
    %p87 = por %p85, %p86
    %p89 = scmp.ne.s32.totalorder %s72, %s88
    %p90 = scmp.eq.s32.totalorder %s15, 0
    %p91 = por %p89, %p90
    %s93 = sadd.s32 %s92, 1
    %p96 = scmp.eq.s32.totalorder %s9, 3
    %p97 = scmp.ne.s32.totalorder %s92, %s94
    %p98 = scmp.eq.s32.totalorder %s9, 0
    %p99 = por %p97, %p98
    %p100 = scmp.ne.s32.totalorder %s92, %s94
    %p101 = scmp.eq.s32.totalorder %s14, 3
    %p102 = por %p100, %p101
    %p103 = scmp.ne.s32.totalorder %s94, %s95
    %p104 = scmp.eq.s32.totalorder %s14, 0
    %p105 = por %p103, %p104
    %p106 = scmp.ne.s32.totalorder %s94, %s95
    %p107 = scmp.eq.s32.totalorder %s15, 3
    %p108 = por %p106, %p107
    %p110 = scmp.ne.s32.totalorder %s95, %s109
    %p111 = scmp.eq.s32.totalorder %s15, 0
    %p112 = por %p110, %p111
    %s113 = ssub.s32 %s16, %s35
    %s114 = ssub.s32 %s17, %s31
    %s115 = sor.u32 %s113, %s114
    %p116 = scmp.eq.s32.totalorder %s115, 0
    %s118 = sadd.s32 %s117, 1
    %s119 = scalar_select %p116, %s117, %s118
    %p122 = pneg %p116
    %p123 = scmp.eq.s32.totalorder %s9, 3
    %p124 = por %p122, %p123
    %p125 = scmp.ne.s32.totalorder %s117, %s120
    %p126 = scmp.eq.s32.totalorder %s9, 0
    %p127 = por %p125, %p126
    %p128 = scmp.ne.s32.totalorder %s117, %s120
    %p129 = scmp.eq.s32.totalorder %s14, 3
    %p130 = por %p128, %p129
    %p131 = scmp.ne.s32.totalorder %s120, %s121
    %p132 = scmp.eq.s32.totalorder %s14, 0
    %p133 = por %p131, %p132
    %p134 = scmp.ne.s32.totalorder %s120, %s121
    %p135 = scmp.eq.s32.totalorder %s15, 3
    %p136 = por %p134, %p135
    %p138 = scmp.ne.s32.totalorder %s121, %s137
    %p139 = scmp.eq.s32.totalorder %s15, 0
    %p140 = por %p138, %p139
    %p141 = scmp.le.s32.totalorder 1, %s9
    %p142 = scmp.lt.s32.totalorder %s9, 5
    %p143 = pnand %p141, %p142
    %p144 = pneg %p143
    // Predicated region
    $region9: #{upsample_block.1} parent=5 // pred_check
      _
    $region10: #{upsample_block.1} parent=5 // pred_check_branch
      %146 = sbr.rel (%p143) target = $region12
    $region11: #{upsample_block.1} parent=5 // pred_region
      %s147 = ssub.s32 %s9, 1
      // Predicated region
      $region13: #{upsample_block.1} parent=11 // pred_check
        %p148 = pneg %p105
      $region14: #{upsample_block.1} parent=11 // pred_check_branch
        %150 = sbr.rel (%p148) target = $region16
      $region15: #{upsample_block.1} parent=11 // pred_region
        _
      $region16: #{upsample_block.1} parent=11 // pred_fallthru
        _
    $region12: #{upsample_block.1} parent=5 // pred_fallthru
      _
    %p151 = scmp.lt.s32.totalorder %s9, 4
    // Predicated region
    $region17: #{upsample_block.1} parent=5 // pred_check
      %p152 = pneg %p151
    $region18: #{upsample_block.1} parent=5 // pred_check_branch
      %154 = sbr.rel (%p152) target = $region20
    $region19: #{upsample_block.1} parent=5 // pred_region
      // Predicated region
      $region21: #{upsample_block.1} parent=19 // pred_check
        %p155 = pneg %p52
      $region22: #{upsample_block.1} parent=19 // pred_check_branch
        %157 = sbr.rel (%p155) target = $region24
      $region23: #{upsample_block.1} parent=19 // pred_region
        %s158 = smul.u32 64, %s17
        %p159 = scmp.lt.s32.totalorder %s16, 3
        %s160 = scalar_select %p159, %s16, 3
        %p161 = scmp.lt.s32.totalorder %s158, 63
        %s162 = scalar_select %p161, %s158, 63
        %p163 = scmp.lt.s32.totalorder %s18, 0
        %s164 = scalar_select %p163, %s18, 0
        %s165 = sadd.s32 %s164, %s162
        %s166 = smul.addr %s160, 64
        %s167 = sadd.s32 %s165, %s166
        %s168 = smul.addr %s167, 4
        %s169 = scalar_lea.vmem %s0, %s168
        %s170 = smul.u32 64, %s17
      $region24: #{upsample_block.1} parent=19 // pred_fallthru
        _
      // Predicated region
      $region25: #{upsample_block.1} parent=19 // pred_check
        %p171 = pneg %p78
      $region26: #{upsample_block.1} parent=19 // pred_check_branch
        %173 = sbr.rel (%p171) target = $region28
      $region27: #{upsample_block.1} parent=19 // pred_region
        %p174 = scmp.lt.s32.totalorder %s16, 3
        %s175 = scalar_select %p174, %s16, 3
        %s176 = smul.addr %s175, 16
        %s177 = smul.addr %s176, 4
        %s178 = scalar_lea.vmem %s1, %s177
      $region28: #{upsample_block.1} parent=19 // pred_fallthru
        _
    $region20: #{upsample_block.1} parent=5 // pred_fallthru
      _
    %p179 = scmp.le.s32.totalorder 1, %s9
    %p180 = scmp.lt.s32.totalorder %s9, 5
    %p181 = pnand %p179, %p180
    %p182 = pneg %p181
    // Predicated region
    $region29: #{upsample_block.1} parent=5 // pred_check
      _
    $region30: #{upsample_block.1} parent=5 // pred_check_branch
      %184 = sbr.rel (%p181) target = $region32
    $region31: #{upsample_block.1} parent=5 // pred_region
      %s185 = ssub.s32 %s9, 1
      %s186 = smul.u32 64, %s20
      %p187 = scmp.lt.s32.totalorder %s19, 3
      %s188 = scalar_select %p187, %s19, 3
      %p189 = scmp.lt.s32.totalorder %s186, 63
      %s190 = scalar_select %p189, %s186, 63
      %p191 = scmp.lt.s32.totalorder %s21, 0
      %s192 = scalar_select %p191, %s21, 0
      %s193 = sadd.s32 %s192, %s190
      %s194 = smul.addr %s188, 64
      %s195 = sadd.s32 %s193, %s194
      %s196 = smul.addr %s195, 4
      %s197 = scalar_lea.vmem %s0, %s196
      %p198 = pneg %p58
      %p199 = pneg %p55
      %p200 = scmp.lt.s32.totalorder %s19, 3
      %s201 = scalar_select %p200, %s19, 3
      %s202 = smul.addr %s201, 16
      %s203 = smul.addr %s202, 4
      %s204 = scalar_lea.vmem %s1, %s203
      %p205 = pneg %p84
      %p206 = pneg %p81
      %p207 = pneg %p105
      %p208 = pneg %p102
      %p209 = pneg %p133
      %p210 = pneg %p130
      %s211 = smul.u32 64, %s20
      %p212 = scmp.lt.s32.totalorder %s19, 3
      %s213 = scalar_select %p212, %s19, 3
      %p214 = scmp.lt.s32.totalorder %s211, 63
      %s215 = scalar_select %p214, %s211, 63
      %s216 = smul.addr %s213, 64
      %s217 = sadd.s32 %s215, %s216
      %s218 = smul.addr %s217, 8
      %s219 = scalar_lea.vmem %s3, %s218
      %s220 = smul.u32 64, %s20
      %p221 = scmp.lt.s32.totalorder %s19, 3
      %s222 = scalar_select %p221, %s19, 3
      %p223 = scmp.lt.s32.totalorder %s220, 63
      %s224 = scalar_select %p223, %s220, 63
      %p225 = scmp.lt.s32.totalorder %s21, 0
      %s226 = scalar_select %p225, %s21, 0
      %s227 = sadd.s32 %s226, %s224
      %s228 = smul.addr %s222, 64
      %s229 = sadd.s32 %s227, %s228
      %s230 = smul.addr %s229, 4
      %s231 = scalar_lea.vmem %s0, %s230
      %s232 = smul.u32 64, %s20
      %p233 = scmp.lt.s32.totalorder %s19, 3
      %s234 = scalar_select %p233, %s19, 3
      %s235 = smul.addr %s234, 16
      %s236 = smul.addr %s235, 4
      %s237 = scalar_lea.vmem %s1, %s236
      %s238 = smul.u32 64, %s20
      %p239 = scmp.lt.s32.totalorder %s19, 3
      %s240 = scalar_select %p239, %s19, 3
      %p241 = scmp.lt.s32.totalorder %s238, 63
      %s242 = scalar_select %p241, %s238, 63
      %s243 = smul.addr %s240, 64
      %s244 = sadd.s32 %s242, %s243
      %s245 = smul.addr %s244, 8
      %s246 = scalar_lea.vmem %s3, %s245
      %s247 = smul.u32 64, %s20
      %p249 = scmp.eq.s32.totalorder %s21, 0
      // Predicated region
      $region33: #{upsample_block.1} parent=31 // pred_check
        %p250 = pneg %p249
      $region34: #{upsample_block.1} parent=31 // pred_check_branch
        %252 = sbr.rel (%p250) target = $region36
      $region35: #{upsample_block.1} parent=31 // pred_region
        %253 = vst [vmem:[#allocation2] sm:$0xff] 0.0
        %254 = vst [vmem:[#allocation2 + $0x8] sm:$0xff] 0.0
        %255 = vst [vmem:[#allocation2 + $0x10] sm:$0xff] 0.0
        %256 = vst [vmem:[#allocation2 + $0x18] sm:$0xff] 0.0
        %257 = vst [vmem:[#allocation2 + $0x20] sm:$0xff] 0.0
        %258 = vst [vmem:[#allocation2 + $0x28] sm:$0xff] 0.0
        %259 = vst [vmem:[#allocation2 + $0x30] sm:$0xff] 0.0
        %260 = vst [vmem:[#allocation2 + $0x38] sm:$0xff] 0.0
        %261 = vst [vmem:[#allocation2 + $0x40] sm:$0xff] 0.0
        %262 = vst [vmem:[#allocation2 + $0x48] sm:$0xff] 0.0
        %263 = vst [vmem:[#allocation2 + $0x50] sm:$0xff] 0.0
        %264 = vst [vmem:[#allocation2 + $0x58] sm:$0xff] 0.0
        %265 = vst [vmem:[#allocation2 + $0x60] sm:$0xff] 0.0
        %266 = vst [vmem:[#allocation2 + $0x68] sm:$0xff] 0.0
        %267 = vst [vmem:[#allocation2 + $0x70] sm:$0xff] 0.0
        %268 = vst [vmem:[#allocation2 + $0x78] sm:$0xff] 0.0
        %269 = vst [vmem:[#allocation2 + $0x80] sm:$0xff] 0.0
        %270 = vst [vmem:[#allocation2 + $0x88] sm:$0xff] 0.0
        %271 = vst [vmem:[#allocation2 + $0x90] sm:$0xff] 0.0
        %272 = vst [vmem:[#allocation2 + $0x98] sm:$0xff] 0.0
        %273 = vst [vmem:[#allocation2 + $0xa0] sm:$0xff] 0.0
        %274 = vst [vmem:[#allocation2 + $0xa8] sm:$0xff] 0.0
        %275 = vst [vmem:[#allocation2 + $0xb0] sm:$0xff] 0.0
        %276 = vst [vmem:[#allocation2 + $0xb8] sm:$0xff] 0.0
        %277 = vst [vmem:[#allocation2 + $0xc0] sm:$0xff] 0.0
        %278 = vst [vmem:[#allocation2 + $0xc8] sm:$0xff] 0.0
        %279 = vst [vmem:[#allocation2 + $0xd0] sm:$0xff] 0.0
        %280 = vst [vmem:[#allocation2 + $0xd8] sm:$0xff] 0.0
        %281 = vst [vmem:[#allocation2 + $0xe0] sm:$0xff] 0.0
        %282 = vst [vmem:[#allocation2 + $0xe8] sm:$0xff] 0.0
        %283 = vst [vmem:[#allocation2 + $0xf0] sm:$0xff] 0.0
        %284 = vst [vmem:[#allocation2 + $0xf8] sm:$0xff] 0.0
        %285 = vst [vmem:[#allocation2 + $0x100] sm:$0xff] 0.0
        %286 = vst [vmem:[#allocation2 + $0x108] sm:$0xff] 0.0
        %287 = vst [vmem:[#allocation2 + $0x110] sm:$0xff] 0.0
        %288 = vst [vmem:[#allocation2 + $0x118] sm:$0xff] 0.0
        %289 = vst [vmem:[#allocation2 + $0x120] sm:$0xff] 0.0
        %290 = vst [vmem:[#allocation2 + $0x128] sm:$0xff] 0.0
        %291 = vst [vmem:[#allocation2 + $0x130] sm:$0xff] 0.0
        %292 = vst [vmem:[#allocation2 + $0x138] sm:$0xff] 0.0
        %293 = vst [vmem:[#allocation2 + $0x140] sm:$0xff] 0.0
        %294 = vst [vmem:[#allocation2 + $0x148] sm:$0xff] 0.0
        %295 = vst [vmem:[#allocation2 + $0x150] sm:$0xff] 0.0
        %296 = vst [vmem:[#allocation2 + $0x158] sm:$0xff] 0.0
        %297 = vst [vmem:[#allocation2 + $0x160] sm:$0xff] 0.0
        %298 = vst [vmem:[#allocation2 + $0x168] sm:$0xff] 0.0
        %299 = vst [vmem:[#allocation2 + $0x170] sm:$0xff] 0.0
        %300 = vst [vmem:[#allocation2 + $0x178] sm:$0xff] 0.0
        %301 = vst [vmem:[#allocation2 + $0x180] sm:$0xff] 0.0
        %302 = vst [vmem:[#allocation2 + $0x188] sm:$0xff] 0.0
        %303 = vst [vmem:[#allocation2 + $0x190] sm:$0xff] 0.0
        %304 = vst [vmem:[#allocation2 + $0x198] sm:$0xff] 0.0
        %305 = vst [vmem:[#allocation2 + $0x1a0] sm:$0xff] 0.0
        %306 = vst [vmem:[#allocation2 + $0x1a8] sm:$0xff] 0.0
        %307 = vst [vmem:[#allocation2 + $0x1b0] sm:$0xff] 0.0
        %308 = vst [vmem:[#allocation2 + $0x1b8] sm:$0xff] 0.0
        %309 = vst [vmem:[#allocation2 + $0x1c0] sm:$0xff] 0.0
        %310 = vst [vmem:[#allocation2 + $0x1c8] sm:$0xff] 0.0
        %311 = vst [vmem:[#allocation2 + $0x1d0] sm:$0xff] 0.0
        %312 = vst [vmem:[#allocation2 + $0x1d8] sm:$0xff] 0.0
        %313 = vst [vmem:[#allocation2 + $0x1e0] sm:$0xff] 0.0
        %314 = vst [vmem:[#allocation2 + $0x1e8] sm:$0xff] 0.0
        %315 = vst [vmem:[#allocation2 + $0x1f0] sm:$0xff] 0.0
        %316 = vst [vmem:[#allocation2 + $0x1f8] sm:$0xff] 0.0
      $region36: #{upsample_block.1} parent=31 // pred_fallthru
        _
      %s317 = smul.u32 %s21, 128
      %v318 = vld [vmem:[#allocation2] sm:$0xff]
      %v319 = vld [vmem:[#allocation2 + $0x8] sm:$0xff]
      %v320 = vld [vmem:[#allocation2 + $0x10] sm:$0xff]
      %v321 = vld [vmem:[#allocation2 + $0x18] sm:$0xff]
      %v322 = vld [vmem:[#allocation2 + $0x20] sm:$0xff]
      %v323 = vld [vmem:[#allocation2 + $0x28] sm:$0xff]
      %v324 = vld [vmem:[#allocation2 + $0x30] sm:$0xff]
      %v325 = vld [vmem:[#allocation2 + $0x38] sm:$0xff]
      %v326 = vld [vmem:[#allocation2 + $0x40] sm:$0xff]
      %v327 = vld [vmem:[#allocation2 + $0x48] sm:$0xff]
      %v328 = vld [vmem:[#allocation2 + $0x50] sm:$0xff]
      %v329 = vld [vmem:[#allocation2 + $0x58] sm:$0xff]
      %v330 = vld [vmem:[#allocation2 + $0x60] sm:$0xff]
      %v331 = vld [vmem:[#allocation2 + $0x68] sm:$0xff]
      %v332 = vld [vmem:[#allocation2 + $0x70] sm:$0xff]
      %v333 = vld [vmem:[#allocation2 + $0x78] sm:$0xff]
      %v334 = vld [vmem:[#allocation2 + $0x80] sm:$0xff]
      %v335 = vld [vmem:[#allocation2 + $0x88] sm:$0xff]
      %v336 = vld [vmem:[#allocation2 + $0x90] sm:$0xff]
      %v337 = vld [vmem:[#allocation2 + $0x98] sm:$0xff]
      %v338 = vld [vmem:[#allocation2 + $0xa0] sm:$0xff]
      %v339 = vld [vmem:[#allocation2 + $0xa8] sm:$0xff]
      %v340 = vld [vmem:[#allocation2 + $0xb0] sm:$0xff]
      %v341 = vld [vmem:[#allocation2 + $0xb8] sm:$0xff]
      %v342 = vld [vmem:[#allocation2 + $0xc0] sm:$0xff]
      %v343 = vld [vmem:[#allocation2 + $0xc8] sm:$0xff]
      %v344 = vld [vmem:[#allocation2 + $0xd0] sm:$0xff]
      %v345 = vld [vmem:[#allocation2 + $0xd8] sm:$0xff]
      %v346 = vld [vmem:[#allocation2 + $0xe0] sm:$0xff]
      %v347 = vld [vmem:[#allocation2 + $0xe8] sm:$0xff]
      %v348 = vld [vmem:[#allocation2 + $0xf0] sm:$0xff]
      %v349 = vld [vmem:[#allocation2 + $0xf8] sm:$0xff]
      %v350 = vld [vmem:[#allocation2 + $0x100] sm:$0xff]
      %v351 = vld [vmem:[#allocation2 + $0x108] sm:$0xff]
      %v352 = vld [vmem:[#allocation2 + $0x110] sm:$0xff]
      %v353 = vld [vmem:[#allocation2 + $0x118] sm:$0xff]
      %v354 = vld [vmem:[#allocation2 + $0x120] sm:$0xff]
      %v355 = vld [vmem:[#allocation2 + $0x128] sm:$0xff]
      %v356 = vld [vmem:[#allocation2 + $0x130] sm:$0xff]
      %v357 = vld [vmem:[#allocation2 + $0x138] sm:$0xff]
      %v358 = vld [vmem:[#allocation2 + $0x140] sm:$0xff]
      %v359 = vld [vmem:[#allocation2 + $0x148] sm:$0xff]
      %v360 = vld [vmem:[#allocation2 + $0x150] sm:$0xff]
      %v361 = vld [vmem:[#allocation2 + $0x158] sm:$0xff]
      %v362 = vld [vmem:[#allocation2 + $0x160] sm:$0xff]
      %v363 = vld [vmem:[#allocation2 + $0x168] sm:$0xff]
      %v364 = vld [vmem:[#allocation2 + $0x170] sm:$0xff]
      %v365 = vld [vmem:[#allocation2 + $0x178] sm:$0xff]
      %v366 = vld [vmem:[#allocation2 + $0x180] sm:$0xff]
      %v367 = vld [vmem:[#allocation2 + $0x188] sm:$0xff]
      %v368 = vld [vmem:[#allocation2 + $0x190] sm:$0xff]
      %v369 = vld [vmem:[#allocation2 + $0x198] sm:$0xff]
      %v370 = vld [vmem:[#allocation2 + $0x1a0] sm:$0xff]
      %v371 = vld [vmem:[#allocation2 + $0x1a8] sm:$0xff]
      %v372 = vld [vmem:[#allocation2 + $0x1b0] sm:$0xff]
      %v373 = vld [vmem:[#allocation2 + $0x1b8] sm:$0xff]
      %v374 = vld [vmem:[#allocation2 + $0x1c0] sm:$0xff]
      %v375 = vld [vmem:[#allocation2 + $0x1c8] sm:$0xff]
      %v376 = vld [vmem:[#allocation2 + $0x1d0] sm:$0xff]
      %v377 = vld [vmem:[#allocation2 + $0x1d8] sm:$0xff]
      %v378 = vld [vmem:[#allocation2 + $0x1e0] sm:$0xff]
      %v379 = vld [vmem:[#allocation2 + $0x1e8] sm:$0xff]
      %v380 = vld [vmem:[#allocation2 + $0x1f0] sm:$0xff]
      %v381 = vld [vmem:[#allocation2 + $0x1f8] sm:$0xff]
      %v382 = vld [vmem:[%s231] sm:$0xf]
      %v383 = vld [vmem:[%s231 + $0x4] sm:$0xf]
      %v384 = vld [vmem:[%s231 + $0x8] sm:$0xf]
      %v385 = vld [vmem:[%s231 + $0xc] sm:$0xf]
      %v386 = vld [vmem:[%s231 + $0x10] sm:$0xf]
      %v387 = vld [vmem:[%s231 + $0x14] sm:$0xf]
      %v388 = vld [vmem:[%s231 + $0x18] sm:$0xf]
      %v389 = vld [vmem:[%s231 + $0x1c] sm:$0xf]
      %v390 = vld [vmem:[%s231 + $0x20] sm:$0xf]
      %v391 = vld [vmem:[%s231 + $0x24] sm:$0xf]
      %v392 = vld [vmem:[%s231 + $0x28] sm:$0xf]
      %v393 = vld [vmem:[%s231 + $0x2c] sm:$0xf]
      %v394 = vld [vmem:[%s231 + $0x30] sm:$0xf]
      %v395 = vld [vmem:[%s231 + $0x34] sm:$0xf]
      %v396 = vld [vmem:[%s231 + $0x38] sm:$0xf]
      %v397 = vld [vmem:[%s231 + $0x3c] sm:$0xf]
      %v398 = vld [vmem:[%s231 + $0x40] sm:$0xf]
      %v399 = vld [vmem:[%s231 + $0x44] sm:$0xf]
      %v400 = vld [vmem:[%s231 + $0x48] sm:$0xf]
      %v401 = vld [vmem:[%s231 + $0x4c] sm:$0xf]
      %v402 = vld [vmem:[%s231 + $0x50] sm:$0xf]
      %v403 = vld [vmem:[%s231 + $0x54] sm:$0xf]
      %v404 = vld [vmem:[%s231 + $0x58] sm:$0xf]
      %v405 = vld [vmem:[%s231 + $0x5c] sm:$0xf]
      %v406 = vld [vmem:[%s231 + $0x60] sm:$0xf]
      %v407 = vld [vmem:[%s231 + $0x64] sm:$0xf]
      %v408 = vld [vmem:[%s231 + $0x68] sm:$0xf]
      %v409 = vld [vmem:[%s231 + $0x6c] sm:$0xf]
      %v410 = vld [vmem:[%s231 + $0x70] sm:$0xf]
      %v411 = vld [vmem:[%s231 + $0x74] sm:$0xf]
      %v412 = vld [vmem:[%s231 + $0x78] sm:$0xf]
      %v413 = vld [vmem:[%s231 + $0x7c] sm:$0xf]
      %v414 = vld [vmem:[%s231 + $0x80] sm:$0xf]
      %v415 = vld [vmem:[%s231 + $0x84] sm:$0xf]
      %v416 = vld [vmem:[%s231 + $0x88] sm:$0xf]
      %v417 = vld [vmem:[%s231 + $0x8c] sm:$0xf]
      %v418 = vld [vmem:[%s231 + $0x90] sm:$0xf]
      %v419 = vld [vmem:[%s231 + $0x94] sm:$0xf]
      %v420 = vld [vmem:[%s231 + $0x98] sm:$0xf]
      %v421 = vld [vmem:[%s231 + $0x9c] sm:$0xf]
      %v422 = vld [vmem:[%s231 + $0xa0] sm:$0xf]
      %v423 = vld [vmem:[%s231 + $0xa4] sm:$0xf]
      %v424 = vld [vmem:[%s231 + $0xa8] sm:$0xf]
      %v425 = vld [vmem:[%s231 + $0xac] sm:$0xf]
      %v426 = vld [vmem:[%s231 + $0xb0] sm:$0xf]
      %v427 = vld [vmem:[%s231 + $0xb4] sm:$0xf]
      %v428 = vld [vmem:[%s231 + $0xb8] sm:$0xf]
      %v429 = vld [vmem:[%s231 + $0xbc] sm:$0xf]
      %v430 = vld [vmem:[%s231 + $0xc0] sm:$0xf]
      %v431 = vld [vmem:[%s231 + $0xc4] sm:$0xf]
      %v432 = vld [vmem:[%s231 + $0xc8] sm:$0xf]
      %v433 = vld [vmem:[%s231 + $0xcc] sm:$0xf]
      %v434 = vld [vmem:[%s231 + $0xd0] sm:$0xf]
      %v435 = vld [vmem:[%s231 + $0xd4] sm:$0xf]
      %v436 = vld [vmem:[%s231 + $0xd8] sm:$0xf]
      %v437 = vld [vmem:[%s231 + $0xdc] sm:$0xf]
      %v438 = vld [vmem:[%s231 + $0xe0] sm:$0xf]
      %v439 = vld [vmem:[%s231 + $0xe4] sm:$0xf]
      %v440 = vld [vmem:[%s231 + $0xe8] sm:$0xf]
      %v441 = vld [vmem:[%s231 + $0xec] sm:$0xf]
      %v442 = vld [vmem:[%s231 + $0xf0] sm:$0xf]
      %v443 = vld [vmem:[%s231 + $0xf4] sm:$0xf]
      %v444 = vld [vmem:[%s231 + $0xf8] sm:$0xf]
      %v445 = vld [vmem:[%s231 + $0xfc] sm:$0xf]
      %s446 = sshra.s32 %s317, 3
      %s447 = sand.u32 %s317, 7
      %s448 = smul.addr %s446, 4
      %s449 = scalar_lea.vmem %s237, %s448
      %v450 = vld [vmem:[%s449] sm:$0xf]
      %v451 = vld [vmem:[%s449 + $0x4] sm:$0xf]
      %v452 = vld [vmem:[%s449 + $0x8] sm:$0xf]
      %v453 = vld [vmem:[%s449 + $0xc] sm:$0xf]
      %v454 = vld [vmem:[%s449 + $0x10] sm:$0xf]
      %v455 = vld [vmem:[%s449 + $0x14] sm:$0xf]
      %v456 = vld [vmem:[%s449 + $0x18] sm:$0xf]
      %v457 = vld [vmem:[%s449 + $0x1c] sm:$0xf]
      %v458 = vld [vmem:[%s449 + $0x20] sm:$0xf]
      %v459 = vld [vmem:[%s449 + $0x24] sm:$0xf]
      %v460 = vld [vmem:[%s449 + $0x28] sm:$0xf]
      %v461 = vld [vmem:[%s449 + $0x2c] sm:$0xf]
      %v462 = vld [vmem:[%s449 + $0x30] sm:$0xf]
      %v463 = vld [vmem:[%s449 + $0x34] sm:$0xf]
      %v464 = vld [vmem:[%s449 + $0x38] sm:$0xf]
      %v465 = vld [vmem:[%s449 + $0x3c] sm:$0xf]
      %v530 = vunpack.c.l.b16 %v382
      %v531 = vunpack.c.l.b16 %v383
      %v532 = vunpack.c.l.b16 %v384
      %v533 = vunpack.c.l.b16 %v385
      %v534 = vunpack.c.l.b16 %v386
      %v535 = vunpack.c.l.b16 %v387
      %v536 = vunpack.c.l.b16 %v388
      %v537 = vunpack.c.l.b16 %v389
      %v538 = vunpack.c.l.b16 %v390
      %v539 = vunpack.c.l.b16 %v391
      %v540 = vunpack.c.l.b16 %v392
      %v541 = vunpack.c.l.b16 %v393
      %v542 = vunpack.c.l.b16 %v394
      %v543 = vunpack.c.l.b16 %v395
      %v544 = vunpack.c.l.b16 %v396
      %v545 = vunpack.c.l.b16 %v397
      %v546 = vunpack.c.l.b16 %v398
      %v547 = vunpack.c.l.b16 %v399
      %v548 = vunpack.c.l.b16 %v400
      %v549 = vunpack.c.l.b16 %v401
      %v550 = vunpack.c.l.b16 %v402
      %v551 = vunpack.c.l.b16 %v403
      %v552 = vunpack.c.l.b16 %v404
      %v553 = vunpack.c.l.b16 %v405
      %v554 = vunpack.c.l.b16 %v406
      %v555 = vunpack.c.l.b16 %v407
      %v556 = vunpack.c.l.b16 %v408
      %v557 = vunpack.c.l.b16 %v409
      %v558 = vunpack.c.l.b16 %v410
      %v559 = vunpack.c.l.b16 %v411
      %v560 = vunpack.c.l.b16 %v412
      %v561 = vunpack.c.l.b16 %v413
      %v562 = vunpack.c.l.b16 %v414
      %v563 = vunpack.c.l.b16 %v415
      %v564 = vunpack.c.l.b16 %v416
      %v565 = vunpack.c.l.b16 %v417
      %v566 = vunpack.c.l.b16 %v418
      %v567 = vunpack.c.l.b16 %v419
      %v568 = vunpack.c.l.b16 %v420
      %v569 = vunpack.c.l.b16 %v421
      %v570 = vunpack.c.l.b16 %v422
      %v571 = vunpack.c.l.b16 %v423
      %v572 = vunpack.c.l.b16 %v424
      %v573 = vunpack.c.l.b16 %v425
      %v574 = vunpack.c.l.b16 %v426
      %v575 = vunpack.c.l.b16 %v427
      %v576 = vunpack.c.l.b16 %v428
      %v577 = vunpack.c.l.b16 %v429
      %v578 = vunpack.c.l.b16 %v430
      %v579 = vunpack.c.l.b16 %v431
      %v580 = vunpack.c.l.b16 %v432
      %v581 = vunpack.c.l.b16 %v433
      %v582 = vunpack.c.l.b16 %v434
      %v583 = vunpack.c.l.b16 %v435
      %v584 = vunpack.c.l.b16 %v436
      %v585 = vunpack.c.l.b16 %v437
      %v586 = vunpack.c.l.b16 %v438
      %v587 = vunpack.c.l.b16 %v439
      %v588 = vunpack.c.l.b16 %v440
      %v589 = vunpack.c.l.b16 %v441
      %v590 = vunpack.c.l.b16 %v442
      %v591 = vunpack.c.l.b16 %v443
      %v592 = vunpack.c.l.b16 %v444
      %v593 = vunpack.c.l.b16 %v445
      %v594 = vpack.c.b16 %v531, %v530
      %v595 = vpack.c.b16 %v533, %v532
      %v596 = vpack.c.b16 %v535, %v534
      %v597 = vpack.c.b16 %v537, %v536
      %v598 = vpack.c.b16 %v539, %v538
      %v599 = vpack.c.b16 %v541, %v540
      %v600 = vpack.c.b16 %v543, %v542
      %v601 = vpack.c.b16 %v545, %v544
      %v602 = vpack.c.b16 %v547, %v546
      %v603 = vpack.c.b16 %v549, %v548
      %v604 = vpack.c.b16 %v551, %v550
      %v605 = vpack.c.b16 %v553, %v552
      %v606 = vpack.c.b16 %v555, %v554
      %v607 = vpack.c.b16 %v557, %v556
      %v608 = vpack.c.b16 %v559, %v558
      %v609 = vpack.c.b16 %v561, %v560
      %v610 = vpack.c.b16 %v563, %v562
      %v611 = vpack.c.b16 %v565, %v564
      %v612 = vpack.c.b16 %v567, %v566
      %v613 = vpack.c.b16 %v569, %v568
      %v614 = vpack.c.b16 %v571, %v570
      %v615 = vpack.c.b16 %v573, %v572
      %v616 = vpack.c.b16 %v575, %v574
      %v617 = vpack.c.b16 %v577, %v576
      %v618 = vpack.c.b16 %v579, %v578
      %v619 = vpack.c.b16 %v581, %v580
      %v620 = vpack.c.b16 %v583, %v582
      %v621 = vpack.c.b16 %v585, %v584
      %v622 = vpack.c.b16 %v587, %v586
      %v623 = vpack.c.b16 %v589, %v588
      %v624 = vpack.c.b16 %v591, %v590
      %v625 = vpack.c.b16 %v593, %v592
      %v674 = vunpack.c.l.b16 %v450
      %v675 = vunpack.c.l.b16 %v451
      %v676 = vunpack.c.l.b16 %v452
      %v677 = vunpack.c.l.b16 %v453
      %v678 = vunpack.c.l.b16 %v454
      %v679 = vunpack.c.l.b16 %v455
      %v680 = vunpack.c.l.b16 %v456
      %v681 = vunpack.c.l.b16 %v457
      %v682 = vunpack.c.l.b16 %v458
      %v683 = vunpack.c.l.b16 %v459
      %v684 = vunpack.c.l.b16 %v460
      %v685 = vunpack.c.l.b16 %v461
      %v686 = vunpack.c.l.b16 %v462
      %v687 = vunpack.c.l.b16 %v463
      %v688 = vunpack.c.l.b16 %v464
      %v689 = vunpack.c.l.b16 %v465
      %v690 = vpack.c.b16 %v675, %v674
      %v691 = vpack.c.b16 %v677, %v676
      %v692 = vpack.c.b16 %v679, %v678
      %v693 = vpack.c.b16 %v681, %v680
      %v694 = vpack.c.b16 %v683, %v682
      %v695 = vpack.c.b16 %v685, %v684
      %v696 = vpack.c.b16 %v687, %v686
      %v697 = vpack.c.b16 %v689, %v688
      %706 = vmatprep.subr.bf16.mxu0 0
      %707 = vmatpush1.bf16.msra.mxu0 %v690
      %708 = vmatprep.subr.bf16.mxu0 0
      %709 = vmatpush1.bf16.msra.mxu0 %v691
      %710 = vmatprep.subr.bf16.mxu0 0
      %711 = vmatpush1.bf16.msra.mxu0 %v692
      %712 = vmatprep.subr.bf16.mxu0 0
      %713 = vmatpush1.bf16.msra.mxu0 %v693
      %714 = vmatprep.subr.bf16.mxu0 0
      %715 = vmatpush1.bf16.msra.mxu0 %v694
      %716 = vmatprep.subr.bf16.mxu0 0
      %717 = vmatpush1.bf16.msra.mxu0 %v695
      %718 = vmatprep.subr.bf16.mxu0 0
      %719 = vmatpush1.bf16.msra.mxu0 %v696
      %720 = vmatprep.subr.bf16.mxu0 0
      %721 = vmatpush1.bf16.msra.mxu0 %v697
      %722 = vmatprep.subr.bf16.mxu0 0
      %723 = vmatpush1.bf16.msra.mxu0 0
      %724 = vmatprep.subr.bf16.mxu0 0
      %725 = vmatpush1.bf16.msra.mxu0 0
      %726 = vmatprep.subr.bf16.mxu0 0
      %727 = vmatpush1.bf16.msra.mxu0 0
      %728 = vmatprep.subr.bf16.mxu0 0
      %729 = vmatpush1.bf16.msra.mxu0 0
      %730 = vmatprep.subr.bf16.mxu0 0
      %731 = vmatpush1.bf16.msra.mxu0 0
      %732 = vmatprep.subr.bf16.mxu0 0
      %733 = vmatpush1.bf16.msra.mxu0 0
      %734 = vmatprep.subr.bf16.mxu0 0
      %735 = vmatpush1.bf16.msra.mxu0 0
      %736 = vmatprep.subr.bf16.mxu0 0
      %737 = vmatpush1.bf16.msra.mxu0 0
      %738 = vmatprep.mubr.bf16.mxu0 0
      %739 = vmatmul.mubr.bf16.gmra.mrb[0].mxu0 %v594
      %v740 = vpop.f32.mrb[0].mxu0
      %v741 = vadd.f32 0.0, %v740
      %v742 = vpop.f32.mrb[0].mxu0
      %v743 = vpop.f32.mrb[0].mxu0
      %v744 = vadd.f32 0.0, %v743
      %v745 = vpop.f32.mrb[0].mxu0
      %746 = vmatprep.mubr.bf16.mxu0 0
      %747 = vmatmul.mubr.bf16.gmra.mrb[0].mxu0 %v595
      %v748 = vpop.f32.mrb[0].mxu0
      %v749 = vadd.f32 0.0, %v748
      %v750 = vpop.f32.mrb[0].mxu0
      %v751 = vpop.f32.mrb[0].mxu0
      %v752 = vadd.f32 0.0, %v751
      %v753 = vpop.f32.mrb[0].mxu0
      %754 = vmatprep.mubr.bf16.mxu0 0
      %755 = vmatmul.mubr.bf16.gmra.mrb[0].mxu0 %v596
      %v756 = vpop.f32.mrb[0].mxu0
      %v757 = vadd.f32 0.0, %v756
      %v758 = vpop.f32.mrb[0].mxu0
      %v759 = vpop.f32.mrb[0].mxu0
      %v760 = vadd.f32 0.0, %v759
      %v761 = vpop.f32.mrb[0].mxu0
      %762 = vmatprep.mubr.bf16.mxu0 0
      %763 = vmatmul.mubr.bf16.gmra.mrb[0].mxu0 %v597
      %v764 = vpop.f32.mrb[0].mxu0
      %v765 = vadd.f32 0.0, %v764
      %v766 = vpop.f32.mrb[0].mxu0
      %v767 = vpop.f32.mrb[0].mxu0
      %v768 = vadd.f32 0.0, %v767
      %v769 = vpop.f32.mrb[0].mxu0
      %770 = vmatprep.mubr.bf16.mxu0 0
      %771 = vmatmul.mubr.bf16.gmra.mrb[0].mxu0 %v598
      %v772 = vpop.f32.mrb[0].mxu0
      %v773 = vadd.f32 0.0, %v772
      %v774 = vpop.f32.mrb[0].mxu0
      %v775 = vpop.f32.mrb[0].mxu0
      %v776 = vadd.f32 0.0, %v775
      %v777 = vpop.f32.mrb[0].mxu0
      %778 = vmatprep.mubr.bf16.mxu0 0
      %779 = vmatmul.mubr.bf16.gmra.mrb[0].mxu0 %v599
      %v780 = vpop.f32.mrb[0].mxu0
      %v781 = vadd.f32 0.0, %v780
      %v782 = vpop.f32.mrb[0].mxu0
      %v783 = vpop.f32.mrb[0].mxu0
      %v784 = vadd.f32 0.0, %v783
      %v785 = vpop.f32.mrb[0].mxu0
      %786 = vmatprep.mubr.bf16.mxu0 0
      %787 = vmatmul.mubr.bf16.gmra.mrb[0].mxu0 %v600
      %v788 = vpop.f32.mrb[0].mxu0
      %v789 = vadd.f32 0.0, %v788
      %v790 = vpop.f32.mrb[0].mxu0
      %v791 = vpop.f32.mrb[0].mxu0
      %v792 = vadd.f32 0.0, %v791
      %v793 = vpop.f32.mrb[0].mxu0
      %794 = vmatprep.mubr.bf16.mxu0 0
      %795 = vmatmul.mubr.bf16.gmra.mrb[0].mxu0 %v601
      %v796 = vpop.f32.mrb[0].mxu0
      %v797 = vadd.f32 0.0, %v796
      %v798 = vpop.f32.mrb[0].mxu0
      %v799 = vpop.f32.mrb[0].mxu0
      %v800 = vadd.f32 0.0, %v799
      %v801 = vpop.f32.mrb[0].mxu0
      %802 = vmatprep.mubr.bf16.mxu0 0
      %803 = vmatmul.mubr.bf16.gmra.mrb[0].mxu0 %v602
      %v804 = vpop.f32.mrb[0].mxu0
      %v805 = vadd.f32 0.0, %v804
      %v806 = vpop.f32.mrb[0].mxu0
      %v807 = vpop.f32.mrb[0].mxu0
      %v808 = vadd.f32 0.0, %v807
      %v809 = vpop.f32.mrb[0].mxu0
      %810 = vmatprep.mubr.bf16.mxu0 0
      %811 = vmatmul.mubr.bf16.gmra.mrb[0].mxu0 %v603
      %v812 = vpop.f32.mrb[0].mxu0
      %v813 = vadd.f32 0.0, %v812
      %v814 = vpop.f32.mrb[0].mxu0
      %v815 = vpop.f32.mrb[0].mxu0
      %v816 = vadd.f32 0.0, %v815
      %v817 = vpop.f32.mrb[0].mxu0
      %818 = vmatprep.mubr.bf16.mxu0 0
      %819 = vmatmul.mubr.bf16.gmra.mrb[0].mxu0 %v604
      %v820 = vpop.f32.mrb[0].mxu0
      %v821 = vadd.f32 0.0, %v820
      %v822 = vpop.f32.mrb[0].mxu0
      %v823 = vpop.f32.mrb[0].mxu0
      %v824 = vadd.f32 0.0, %v823
      %v825 = vpop.f32.mrb[0].mxu0
      %826 = vmatprep.mubr.bf16.mxu0 0
      %827 = vmatmul.mubr.bf16.gmra.mrb[0].mxu0 %v605
      %v828 = vpop.f32.mrb[0].mxu0
      %v829 = vadd.f32 0.0, %v828
      %v830 = vpop.f32.mrb[0].mxu0
      %v831 = vpop.f32.mrb[0].mxu0
      %v832 = vadd.f32 0.0, %v831
      %v833 = vpop.f32.mrb[0].mxu0
      %834 = vmatprep.mubr.bf16.mxu0 0
      %835 = vmatmul.mubr.bf16.gmra.mrb[0].mxu0 %v606
      %v836 = vpop.f32.mrb[0].mxu0
      %v837 = vadd.f32 0.0, %v836
      %v838 = vpop.f32.mrb[0].mxu0
      %v839 = vpop.f32.mrb[0].mxu0
      %v840 = vadd.f32 0.0, %v839
      %v841 = vpop.f32.mrb[0].mxu0
      %842 = vmatprep.mubr.bf16.mxu0 0
      %843 = vmatmul.mubr.bf16.gmra.mrb[0].mxu0 %v607
      %v844 = vpop.f32.mrb[0].mxu0
      %v845 = vadd.f32 0.0, %v844
      %v846 = vpop.f32.mrb[0].mxu0
      %v847 = vpop.f32.mrb[0].mxu0
      %v848 = vadd.f32 0.0, %v847
      %v849 = vpop.f32.mrb[0].mxu0
      %850 = vmatprep.mubr.bf16.mxu0 0
      %851 = vmatmul.mubr.bf16.gmra.mrb[0].mxu0 %v608
      %v852 = vpop.f32.mrb[0].mxu0
      %v853 = vadd.f32 0.0, %v852
      %v854 = vpop.f32.mrb[0].mxu0
      %v855 = vpop.f32.mrb[0].mxu0
      %v856 = vadd.f32 0.0, %v855
      %v857 = vpop.f32.mrb[0].mxu0
      %858 = vmatprep.mubr.bf16.mxu0 0
      %859 = vmatmul.mubr.bf16.gmra.mrb[0].mxu0 %v609
      %v860 = vpop.f32.mrb[0].mxu0
      %v861 = vadd.f32 0.0, %v860
      %v862 = vpop.f32.mrb[0].mxu0
      %v863 = vpop.f32.mrb[0].mxu0
      %v864 = vadd.f32 0.0, %v863
      %v865 = vpop.f32.mrb[0].mxu0
      %866 = vmatprep.mubr.bf16.mxu0 0
      %867 = vmatmul.mubr.bf16.gmra.mrb[0].mxu0 %v610
      %v868 = vpop.f32.mrb[0].mxu0
      %v869 = vadd.f32 0.0, %v868
      %v870 = vpop.f32.mrb[0].mxu0
      %v871 = vpop.f32.mrb[0].mxu0
      %v872 = vadd.f32 0.0, %v871
      %v873 = vpop.f32.mrb[0].mxu0
      %874 = vmatprep.mubr.bf16.mxu0 0
      %875 = vmatmul.mubr.bf16.gmra.mrb[0].mxu0 %v611
      %v876 = vpop.f32.mrb[0].mxu0
      %v877 = vadd.f32 0.0, %v876
      %v878 = vpop.f32.mrb[0].mxu0
      %v879 = vpop.f32.mrb[0].mxu0
      %v880 = vadd.f32 0.0, %v879
      %v881 = vpop.f32.mrb[0].mxu0
      %882 = vmatprep.mubr.bf16.mxu0 0
      %883 = vmatmul.mubr.bf16.gmra.mrb[0].mxu0 %v612
      %v884 = vpop.f32.mrb[0].mxu0
      %v885 = vadd.f32 0.0, %v884
      %v886 = vpop.f32.mrb[0].mxu0
      %v887 = vpop.f32.mrb[0].mxu0
      %v888 = vadd.f32 0.0, %v887
      %v889 = vpop.f32.mrb[0].mxu0
      %890 = vmatprep.mubr.bf16.mxu0 0
      %891 = vmatmul.mubr.bf16.gmra.mrb[0].mxu0 %v613
      %v892 = vpop.f32.mrb[0].mxu0
      %v893 = vadd.f32 0.0, %v892
      %v894 = vpop.f32.mrb[0].mxu0
      %v895 = vpop.f32.mrb[0].mxu0
      %v896 = vadd.f32 0.0, %v895
      %v897 = vpop.f32.mrb[0].mxu0
      %898 = vmatprep.mubr.bf16.mxu0 0
      %899 = vmatmul.mubr.bf16.gmra.mrb[0].mxu0 %v614
      %v900 = vpop.f32.mrb[0].mxu0
      %v901 = vadd.f32 0.0, %v900
      %v902 = vpop.f32.mrb[0].mxu0
      %v903 = vpop.f32.mrb[0].mxu0
      %v904 = vadd.f32 0.0, %v903
      %v905 = vpop.f32.mrb[0].mxu0
      %906 = vmatprep.mubr.bf16.mxu0 0
      %907 = vmatmul.mubr.bf16.gmra.mrb[0].mxu0 %v615
      %v908 = vpop.f32.mrb[0].mxu0
      %v909 = vadd.f32 0.0, %v908
      %v910 = vpop.f32.mrb[0].mxu0
      %v911 = vpop.f32.mrb[0].mxu0
      %v912 = vadd.f32 0.0, %v911
      %v913 = vpop.f32.mrb[0].mxu0
      %914 = vmatprep.mubr.bf16.mxu0 0
      %915 = vmatmul.mubr.bf16.gmra.mrb[0].mxu0 %v616
      %v916 = vpop.f32.mrb[0].mxu0
      %v917 = vadd.f32 0.0, %v916
      %v918 = vpop.f32.mrb[0].mxu0
      %v919 = vpop.f32.mrb[0].mxu0
      %v920 = vadd.f32 0.0, %v919
      %v921 = vpop.f32.mrb[0].mxu0
      %922 = vmatprep.mubr.bf16.mxu0 0
      %923 = vmatmul.mubr.bf16.gmra.mrb[0].mxu0 %v617
      %v924 = vpop.f32.mrb[0].mxu0
      %v925 = vadd.f32 0.0, %v924
      %v926 = vpop.f32.mrb[0].mxu0
      %v927 = vpop.f32.mrb[0].mxu0
      %v928 = vadd.f32 0.0, %v927
      %v929 = vpop.f32.mrb[0].mxu0
      %930 = vmatprep.mubr.bf16.mxu0 0
      %931 = vmatmul.mubr.bf16.gmra.mrb[0].mxu0 %v618
      %v932 = vpop.f32.mrb[0].mxu0
      %v933 = vadd.f32 0.0, %v932
      %v934 = vpop.f32.mrb[0].mxu0
      %v935 = vpop.f32.mrb[0].mxu0
      %v936 = vadd.f32 0.0, %v935
      %v937 = vpop.f32.mrb[0].mxu0
      %938 = vmatprep.mubr.bf16.mxu0 0
      %939 = vmatmul.mubr.bf16.gmra.mrb[0].mxu0 %v619
      %v940 = vpop.f32.mrb[0].mxu0
      %v941 = vadd.f32 0.0, %v940
      %v942 = vpop.f32.mrb[0].mxu0
      %v943 = vpop.f32.mrb[0].mxu0
      %v944 = vadd.f32 0.0, %v943
      %v945 = vpop.f32.mrb[0].mxu0
      %946 = vmatprep.mubr.bf16.mxu0 0
      %947 = vmatmul.mubr.bf16.gmra.mrb[0].mxu0 %v620
      %v948 = vpop.f32.mrb[0].mxu0
      %v949 = vadd.f32 0.0, %v948
      %v950 = vpop.f32.mrb[0].mxu0
      %v951 = vpop.f32.mrb[0].mxu0
      %v952 = vadd.f32 0.0, %v951
      %v953 = vpop.f32.mrb[0].mxu0
      %954 = vmatprep.mubr.bf16.mxu0 0
      %955 = vmatmul.mubr.bf16.gmra.mrb[0].mxu0 %v621
      %v956 = vpop.f32.mrb[0].mxu0
      %v957 = vadd.f32 0.0, %v956
      %v958 = vpop.f32.mrb[0].mxu0
      %v959 = vpop.f32.mrb[0].mxu0
      %v960 = vadd.f32 0.0, %v959
      %v961 = vpop.f32.mrb[0].mxu0
      %962 = vmatprep.mubr.bf16.mxu0 0
      %963 = vmatmul.mubr.bf16.gmra.mrb[0].mxu0 %v622
      %v964 = vpop.f32.mrb[0].mxu0
      %v965 = vadd.f32 0.0, %v964
      %v966 = vpop.f32.mrb[0].mxu0
      %v967 = vpop.f32.mrb[0].mxu0
      %v968 = vadd.f32 0.0, %v967
      %v969 = vpop.f32.mrb[0].mxu0
      %970 = vmatprep.mubr.bf16.mxu0 0
      %971 = vmatmul.mubr.bf16.gmra.mrb[0].mxu0 %v623
      %v972 = vpop.f32.mrb[0].mxu0
      %v973 = vadd.f32 0.0, %v972
      %v974 = vpop.f32.mrb[0].mxu0
      %v975 = vpop.f32.mrb[0].mxu0
      %v976 = vadd.f32 0.0, %v975
      %v977 = vpop.f32.mrb[0].mxu0
      %978 = vmatprep.mubr.bf16.mxu0 0
      %979 = vmatmul.mubr.bf16.gmra.mrb[0].mxu0 %v624
      %v980 = vpop.f32.mrb[0].mxu0
      %v981 = vadd.f32 0.0, %v980
      %v982 = vpop.f32.mrb[0].mxu0
      %v983 = vpop.f32.mrb[0].mxu0
      %v984 = vadd.f32 0.0, %v983
      %v985 = vpop.f32.mrb[0].mxu0
      %986 = vmatprep.mubr.bf16.mxu0 0
      %987 = vmatmul.mubr.bf16.gmra.mrb[0].mxu0 %v625
      %v988 = vpop.f32.mrb[0].mxu0
      %v989 = vadd.f32 0.0, %v988
      %v990 = vpop.f32.mrb[0].mxu0
      %v991 = vpop.f32.mrb[0].mxu0
      %v992 = vadd.f32 0.0, %v991
      %v993 = vpop.f32.mrb[0].mxu0
      %994 = vdwg.mxu0
      %v995 = vadd.f32 %v318, %v741
      %v996 = vadd.f32 %v319, %v744
      %v997 = vadd.f32 %v320, %v749
      %v998 = vadd.f32 %v321, %v752
      %v999 = vadd.f32 %v322, %v757
      %v1000 = vadd.f32 %v323, %v760
      %v1001 = vadd.f32 %v324, %v765
      %v1002 = vadd.f32 %v325, %v768
      %v1003 = vadd.f32 %v326, %v773
      %v1004 = vadd.f32 %v327, %v776
      %v1005 = vadd.f32 %v328, %v781
      %v1006 = vadd.f32 %v329, %v784
      %v1007 = vadd.f32 %v330, %v789
      %v1008 = vadd.f32 %v331, %v792
      %v1009 = vadd.f32 %v332, %v797
      %v1010 = vadd.f32 %v333, %v800
      %v1011 = vadd.f32 %v334, %v805
      %v1012 = vadd.f32 %v335, %v808
      %v1013 = vadd.f32 %v336, %v813
      %v1014 = vadd.f32 %v337, %v816
      %v1015 = vadd.f32 %v338, %v821
      %v1016 = vadd.f32 %v339, %v824
      %v1017 = vadd.f32 %v340, %v829
      %v1018 = vadd.f32 %v341, %v832
      %v1019 = vadd.f32 %v342, %v837
      %v1020 = vadd.f32 %v343, %v840
      %v1021 = vadd.f32 %v344, %v845
      %v1022 = vadd.f32 %v345, %v848
      %v1023 = vadd.f32 %v346, %v853
      %v1024 = vadd.f32 %v347, %v856
      %v1025 = vadd.f32 %v348, %v861
      %v1026 = vadd.f32 %v349, %v864
      %v1027 = vadd.f32 %v350, %v869
      %v1028 = vadd.f32 %v351, %v872
      %v1029 = vadd.f32 %v352, %v877
      %v1030 = vadd.f32 %v353, %v880
      %v1031 = vadd.f32 %v354, %v885
      %v1032 = vadd.f32 %v355, %v888
      %v1033 = vadd.f32 %v356, %v893
      %v1034 = vadd.f32 %v357, %v896
      %v1035 = vadd.f32 %v358, %v901
      %v1036 = vadd.f32 %v359, %v904
      %v1037 = vadd.f32 %v360, %v909
      %v1038 = vadd.f32 %v361, %v912
      %v1039 = vadd.f32 %v362, %v917
      %v1040 = vadd.f32 %v363, %v920
      %v1041 = vadd.f32 %v364, %v925
      %v1042 = vadd.f32 %v365, %v928
      %v1043 = vadd.f32 %v366, %v933
      %v1044 = vadd.f32 %v367, %v936
      %v1045 = vadd.f32 %v368, %v941
      %v1046 = vadd.f32 %v369, %v944
      %v1047 = vadd.f32 %v370, %v949
      %v1048 = vadd.f32 %v371, %v952
      %v1049 = vadd.f32 %v372, %v957
      %v1050 = vadd.f32 %v373, %v960
      %v1051 = vadd.f32 %v374, %v965
      %v1052 = vadd.f32 %v375, %v968
      %v1053 = vadd.f32 %v376, %v973
      %v1054 = vadd.f32 %v377, %v976
      %v1055 = vadd.f32 %v378, %v981
      %v1056 = vadd.f32 %v379, %v984
      %v1057 = vadd.f32 %v380, %v989
      %v1058 = vadd.f32 %v381, %v992
      %1059 = vst [vmem:[#allocation2] sm:$0xff] %v995
      %1060 = vst [vmem:[#allocation2 + $0x8] sm:$0xff] %v996
      %1061 = vst [vmem:[#allocation2 + $0x10] sm:$0xff] %v997
      %1062 = vst [vmem:[#allocation2 + $0x18] sm:$0xff] %v998
      %1063 = vst [vmem:[#allocation2 + $0x20] sm:$0xff] %v999
      %1064 = vst [vmem:[#allocation2 + $0x28] sm:$0xff] %v1000
      %1065 = vst [vmem:[#allocation2 + $0x30] sm:$0xff] %v1001
      %1066 = vst [vmem:[#allocation2 + $0x38] sm:$0xff] %v1002
      %1067 = vst [vmem:[#allocation2 + $0x40] sm:$0xff] %v1003
      %1068 = vst [vmem:[#allocation2 + $0x48] sm:$0xff] %v1004
      %1069 = vst [vmem:[#allocation2 + $0x50] sm:$0xff] %v1005
      %1070 = vst [vmem:[#allocation2 + $0x58] sm:$0xff] %v1006
      %1071 = vst [vmem:[#allocation2 + $0x60] sm:$0xff] %v1007
      %1072 = vst [vmem:[#allocation2 + $0x68] sm:$0xff] %v1008
      %1073 = vst [vmem:[#allocation2 + $0x70] sm:$0xff] %v1009
      %1074 = vst [vmem:[#allocation2 + $0x78] sm:$0xff] %v1010
      %1075 = vst [vmem:[#allocation2 + $0x80] sm:$0xff] %v1011
      %1076 = vst [vmem:[#allocation2 + $0x88] sm:$0xff] %v1012
      %1077 = vst [vmem:[#allocation2 + $0x90] sm:$0xff] %v1013
      %1078 = vst [vmem:[#allocation2 + $0x98] sm:$0xff] %v1014
      %1079 = vst [vmem:[#allocation2 + $0xa0] sm:$0xff] %v1015
      %1080 = vst [vmem:[#allocation2 + $0xa8] sm:$0xff] %v1016
      %1081 = vst [vmem:[#allocation2 + $0xb0] sm:$0xff] %v1017
      %1082 = vst [vmem:[#allocation2 + $0xb8] sm:$0xff] %v1018
      %1083 = vst [vmem:[#allocation2 + $0xc0] sm:$0xff] %v1019
      %1084 = vst [vmem:[#allocation2 + $0xc8] sm:$0xff] %v1020
      %1085 = vst [vmem:[#allocation2 + $0xd0] sm:$0xff] %v1021
      %1086 = vst [vmem:[#allocation2 + $0xd8] sm:$0xff] %v1022
      %1087 = vst [vmem:[#allocation2 + $0xe0] sm:$0xff] %v1023
      %1088 = vst [vmem:[#allocation2 + $0xe8] sm:$0xff] %v1024
      %1089 = vst [vmem:[#allocation2 + $0xf0] sm:$0xff] %v1025
      %1090 = vst [vmem:[#allocation2 + $0xf8] sm:$0xff] %v1026
      %1091 = vst [vmem:[#allocation2 + $0x100] sm:$0xff] %v1027
      %1092 = vst [vmem:[#allocation2 + $0x108] sm:$0xff] %v1028
      %1093 = vst [vmem:[#allocation2 + $0x110] sm:$0xff] %v1029
      %1094 = vst [vmem:[#allocation2 + $0x118] sm:$0xff] %v1030
      %1095 = vst [vmem:[#allocation2 + $0x120] sm:$0xff] %v1031
      %1096 = vst [vmem:[#allocation2 + $0x128] sm:$0xff] %v1032
      %1097 = vst [vmem:[#allocation2 + $0x130] sm:$0xff] %v1033
      %1098 = vst [vmem:[#allocation2 + $0x138] sm:$0xff] %v1034
      %1099 = vst [vmem:[#allocation2 + $0x140] sm:$0xff] %v1035
      %1100 = vst [vmem:[#allocation2 + $0x148] sm:$0xff] %v1036
      %1101 = vst [vmem:[#allocation2 + $0x150] sm:$0xff] %v1037
      %1102 = vst [vmem:[#allocation2 + $0x158] sm:$0xff] %v1038
      %1103 = vst [vmem:[#allocation2 + $0x160] sm:$0xff] %v1039
      %1104 = vst [vmem:[#allocation2 + $0x168] sm:$0xff] %v1040
      %1105 = vst [vmem:[#allocation2 + $0x170] sm:$0xff] %v1041
      %1106 = vst [vmem:[#allocation2 + $0x178] sm:$0xff] %v1042
      %1107 = vst [vmem:[#allocation2 + $0x180] sm:$0xff] %v1043
      %1108 = vst [vmem:[#allocation2 + $0x188] sm:$0xff] %v1044
      %1109 = vst [vmem:[#allocation2 + $0x190] sm:$0xff] %v1045
      %1110 = vst [vmem:[#allocation2 + $0x198] sm:$0xff] %v1046
      %1111 = vst [vmem:[#allocation2 + $0x1a0] sm:$0xff] %v1047
      %1112 = vst [vmem:[#allocation2 + $0x1a8] sm:$0xff] %v1048
      %1113 = vst [vmem:[#allocation2 + $0x1b0] sm:$0xff] %v1049
      %1114 = vst [vmem:[#allocation2 + $0x1b8] sm:$0xff] %v1050
      %1115 = vst [vmem:[#allocation2 + $0x1c0] sm:$0xff] %v1051
      %1116 = vst [vmem:[#allocation2 + $0x1c8] sm:$0xff] %v1052
      %1117 = vst [vmem:[#allocation2 + $0x1d0] sm:$0xff] %v1053
      %1118 = vst [vmem:[#allocation2 + $0x1d8] sm:$0xff] %v1054
      %1119 = vst [vmem:[#allocation2 + $0x1e0] sm:$0xff] %v1055
      %1120 = vst [vmem:[#allocation2 + $0x1e8] sm:$0xff] %v1056
      %1121 = vst [vmem:[#allocation2 + $0x1f0] sm:$0xff] %v1057
      %1122 = vst [vmem:[#allocation2 + $0x1f8] sm:$0xff] %v1058
      // Predicated region
      $region37: #{upsample_block.1} parent=31 // pred_check
        %p1123 = pneg %p249
      $region38: #{upsample_block.1} parent=31 // pred_check_branch
        %1125 = sbr.rel (%p1123) target = $region40
      $region39: #{upsample_block.1} parent=31 // pred_region
        %v1126 = vld [vmem:[#allocation2] sm:$0xff]
        %v1127 = vld [vmem:[#allocation2 + $0x8] sm:$0xff]
        %v1128 = vld [vmem:[#allocation2 + $0x10] sm:$0xff]
        %v1129 = vld [vmem:[#allocation2 + $0x18] sm:$0xff]
        %v1130 = vld [vmem:[#allocation2 + $0x20] sm:$0xff]
        %v1131 = vld [vmem:[#allocation2 + $0x28] sm:$0xff]
        %v1132 = vld [vmem:[#allocation2 + $0x30] sm:$0xff]
        %v1133 = vld [vmem:[#allocation2 + $0x38] sm:$0xff]
        %v1134 = vld [vmem:[#allocation2 + $0x40] sm:$0xff]
        %v1135 = vld [vmem:[#allocation2 + $0x48] sm:$0xff]
        %v1136 = vld [vmem:[#allocation2 + $0x50] sm:$0xff]
        %v1137 = vld [vmem:[#allocation2 + $0x58] sm:$0xff]
        %v1138 = vld [vmem:[#allocation2 + $0x60] sm:$0xff]
        %v1139 = vld [vmem:[#allocation2 + $0x68] sm:$0xff]
        %v1140 = vld [vmem:[#allocation2 + $0x70] sm:$0xff]
        %v1141 = vld [vmem:[#allocation2 + $0x78] sm:$0xff]
        %v1142 = vld [vmem:[#allocation2 + $0x80] sm:$0xff]
        %v1143 = vld [vmem:[#allocation2 + $0x88] sm:$0xff]
        %v1144 = vld [vmem:[#allocation2 + $0x90] sm:$0xff]
        %v1145 = vld [vmem:[#allocation2 + $0x98] sm:$0xff]
        %v1146 = vld [vmem:[#allocation2 + $0xa0] sm:$0xff]
        %v1147 = vld [vmem:[#allocation2 + $0xa8] sm:$0xff]
        %v1148 = vld [vmem:[#allocation2 + $0xb0] sm:$0xff]
        %v1149 = vld [vmem:[#allocation2 + $0xb8] sm:$0xff]
        %v1150 = vld [vmem:[#allocation2 + $0xc0] sm:$0xff]
        %v1151 = vld [vmem:[#allocation2 + $0xc8] sm:$0xff]
        %v1152 = vld [vmem:[#allocation2 + $0xd0] sm:$0xff]
        %v1153 = vld [vmem:[#allocation2 + $0xd8] sm:$0xff]
        %v1154 = vld [vmem:[#allocation2 + $0xe0] sm:$0xff]
        %v1155 = vld [vmem:[#allocation2 + $0xe8] sm:$0xff]
        %v1156 = vld [vmem:[#allocation2 + $0xf0] sm:$0xff]
        %v1157 = vld [vmem:[#allocation2 + $0xf8] sm:$0xff]
        %v1158 = vld [vmem:[#allocation2 + $0x100] sm:$0xff]
        %v1159 = vld [vmem:[#allocation2 + $0x108] sm:$0xff]
        %v1160 = vld [vmem:[#allocation2 + $0x110] sm:$0xff]
        %v1161 = vld [vmem:[#allocation2 + $0x118] sm:$0xff]
        %v1162 = vld [vmem:[#allocation2 + $0x120] sm:$0xff]
        %v1163 = vld [vmem:[#allocation2 + $0x128] sm:$0xff]
        %v1164 = vld [vmem:[#allocation2 + $0x130] sm:$0xff]
        %v1165 = vld [vmem:[#allocation2 + $0x138] sm:$0xff]
        %v1166 = vld [vmem:[#allocation2 + $0x140] sm:$0xff]
        %v1167 = vld [vmem:[#allocation2 + $0x148] sm:$0xff]
        %v1168 = vld [vmem:[#allocation2 + $0x150] sm:$0xff]
        %v1169 = vld [vmem:[#allocation2 + $0x158] sm:$0xff]
        %v1170 = vld [vmem:[#allocation2 + $0x160] sm:$0xff]
        %v1171 = vld [vmem:[#allocation2 + $0x168] sm:$0xff]
        %v1172 = vld [vmem:[#allocation2 + $0x170] sm:$0xff]
        %v1173 = vld [vmem:[#allocation2 + $0x178] sm:$0xff]
        %v1174 = vld [vmem:[#allocation2 + $0x180] sm:$0xff]
        %v1175 = vld [vmem:[#allocation2 + $0x188] sm:$0xff]
        %v1176 = vld [vmem:[#allocation2 + $0x190] sm:$0xff]
        %v1177 = vld [vmem:[#allocation2 + $0x198] sm:$0xff]
        %v1178 = vld [vmem:[#allocation2 + $0x1a0] sm:$0xff]
        %v1179 = vld [vmem:[#allocation2 + $0x1a8] sm:$0xff]
        %v1180 = vld [vmem:[#allocation2 + $0x1b0] sm:$0xff]
        %v1181 = vld [vmem:[#allocation2 + $0x1b8] sm:$0xff]
        %v1182 = vld [vmem:[#allocation2 + $0x1c0] sm:$0xff]
        %v1183 = vld [vmem:[#allocation2 + $0x1c8] sm:$0xff]
        %v1184 = vld [vmem:[#allocation2 + $0x1d0] sm:$0xff]
        %v1185 = vld [vmem:[#allocation2 + $0x1d8] sm:$0xff]
        %v1186 = vld [vmem:[#allocation2 + $0x1e0] sm:$0xff]
        %v1187 = vld [vmem:[#allocation2 + $0x1e8] sm:$0xff]
        %v1188 = vld [vmem:[#allocation2 + $0x1f0] sm:$0xff]
        %v1189 = vld [vmem:[#allocation2 + $0x1f8] sm:$0xff]
        %v1190 = vld [vmem:[%s2] sm:$0x1]
        %v1192 = vlaneseq
        %v1193 = vshrl.u32 %v1192, 7
        %v1194 = vsub.s32 0, %v1193
        %v1195 = vrot.slane %v1190, %v1194
        %v1197 = vadd.f32 %v1126, %v1195
        %v1198 = vadd.f32 %v1127, %v1195
        %v1199 = vadd.f32 %v1128, %v1195
        %v1200 = vadd.f32 %v1129, %v1195
        %v1201 = vadd.f32 %v1130, %v1195
        %v1202 = vadd.f32 %v1131, %v1195
        %v1203 = vadd.f32 %v1132, %v1195
        %v1204 = vadd.f32 %v1133, %v1195
        %v1205 = vadd.f32 %v1134, %v1195
        %v1206 = vadd.f32 %v1135, %v1195
        %v1207 = vadd.f32 %v1136, %v1195
        %v1208 = vadd.f32 %v1137, %v1195
        %v1209 = vadd.f32 %v1138, %v1195
        %v1210 = vadd.f32 %v1139, %v1195
        %v1211 = vadd.f32 %v1140, %v1195
        %v1212 = vadd.f32 %v1141, %v1195
        %v1213 = vadd.f32 %v1142, %v1195
        %v1214 = vadd.f32 %v1143, %v1195
        %v1215 = vadd.f32 %v1144, %v1195
        %v1216 = vadd.f32 %v1145, %v1195
        %v1217 = vadd.f32 %v1146, %v1195
        %v1218 = vadd.f32 %v1147, %v1195
        %v1219 = vadd.f32 %v1148, %v1195
        %v1220 = vadd.f32 %v1149, %v1195
        %v1221 = vadd.f32 %v1150, %v1195
        %v1222 = vadd.f32 %v1151, %v1195
        %v1223 = vadd.f32 %v1152, %v1195
        %v1224 = vadd.f32 %v1153, %v1195
        %v1225 = vadd.f32 %v1154, %v1195
        %v1226 = vadd.f32 %v1155, %v1195
        %v1227 = vadd.f32 %v1156, %v1195
        %v1228 = vadd.f32 %v1157, %v1195
        %v1229 = vadd.f32 %v1158, %v1195
        %v1230 = vadd.f32 %v1159, %v1195
        %v1231 = vadd.f32 %v1160, %v1195
        %v1232 = vadd.f32 %v1161, %v1195
        %v1233 = vadd.f32 %v1162, %v1195
        %v1234 = vadd.f32 %v1163, %v1195
        %v1235 = vadd.f32 %v1164, %v1195
        %v1236 = vadd.f32 %v1165, %v1195
        %v1237 = vadd.f32 %v1166, %v1195
        %v1238 = vadd.f32 %v1167, %v1195
        %v1239 = vadd.f32 %v1168, %v1195
        %v1240 = vadd.f32 %v1169, %v1195
        %v1241 = vadd.f32 %v1170, %v1195
        %v1242 = vadd.f32 %v1171, %v1195
        %v1243 = vadd.f32 %v1172, %v1195
        %v1244 = vadd.f32 %v1173, %v1195
        %v1245 = vadd.f32 %v1174, %v1195
        %v1246 = vadd.f32 %v1175, %v1195
        %v1247 = vadd.f32 %v1176, %v1195
        %v1248 = vadd.f32 %v1177, %v1195
        %v1249 = vadd.f32 %v1178, %v1195
        %v1250 = vadd.f32 %v1179, %v1195
        %v1251 = vadd.f32 %v1180, %v1195
        %v1252 = vadd.f32 %v1181, %v1195
        %v1253 = vadd.f32 %v1182, %v1195
        %v1254 = vadd.f32 %v1183, %v1195
        %v1255 = vadd.f32 %v1184, %v1195
        %v1256 = vadd.f32 %v1185, %v1195
        %v1257 = vadd.f32 %v1186, %v1195
        %v1258 = vadd.f32 %v1187, %v1195
        %v1259 = vadd.f32 %v1188, %v1195
        %v1260 = vadd.f32 %v1189, %v1195
        %1261 = vst [vmem:[%s246] sm:$0xff] %v1197
        %1262 = vst [vmem:[%s246 + $0x8] sm:$0xff] %v1198
        %1263 = vst [vmem:[%s246 + $0x10] sm:$0xff] %v1199
        %1264 = vst [vmem:[%s246 + $0x18] sm:$0xff] %v1200
        %1265 = vst [vmem:[%s246 + $0x20] sm:$0xff] %v1201
        %1266 = vst [vmem:[%s246 + $0x28] sm:$0xff] %v1202
        %1267 = vst [vmem:[%s246 + $0x30] sm:$0xff] %v1203
        %1268 = vst [vmem:[%s246 + $0x38] sm:$0xff] %v1204
        %1269 = vst [vmem:[%s246 + $0x40] sm:$0xff] %v1205
        %1270 = vst [vmem:[%s246 + $0x48] sm:$0xff] %v1206
        %1271 = vst [vmem:[%s246 + $0x50] sm:$0xff] %v1207
        %1272 = vst [vmem:[%s246 + $0x58] sm:$0xff] %v1208
        %1273 = vst [vmem:[%s246 + $0x60] sm:$0xff] %v1209
        %1274 = vst [vmem:[%s246 + $0x68] sm:$0xff] %v1210
        %1275 = vst [vmem:[%s246 + $0x70] sm:$0xff] %v1211
        %1276 = vst [vmem:[%s246 + $0x78] sm:$0xff] %v1212
        %1277 = vst [vmem:[%s246 + $0x80] sm:$0xff] %v1213
        %1278 = vst [vmem:[%s246 + $0x88] sm:$0xff] %v1214
        %1279 = vst [vmem:[%s246 + $0x90] sm:$0xff] %v1215
        %1280 = vst [vmem:[%s246 + $0x98] sm:$0xff] %v1216
        %1281 = vst [vmem:[%s246 + $0xa0] sm:$0xff] %v1217
        %1282 = vst [vmem:[%s246 + $0xa8] sm:$0xff] %v1218
        %1283 = vst [vmem:[%s246 + $0xb0] sm:$0xff] %v1219
        %1284 = vst [vmem:[%s246 + $0xb8] sm:$0xff] %v1220
        %1285 = vst [vmem:[%s246 + $0xc0] sm:$0xff] %v1221
        %1286 = vst [vmem:[%s246 + $0xc8] sm:$0xff] %v1222
        %1287 = vst [vmem:[%s246 + $0xd0] sm:$0xff] %v1223
        %1288 = vst [vmem:[%s246 + $0xd8] sm:$0xff] %v1224
        %1289 = vst [vmem:[%s246 + $0xe0] sm:$0xff] %v1225
        %1290 = vst [vmem:[%s246 + $0xe8] sm:$0xff] %v1226
        %1291 = vst [vmem:[%s246 + $0xf0] sm:$0xff] %v1227
        %1292 = vst [vmem:[%s246 + $0xf8] sm:$0xff] %v1228
        %1293 = vst [vmem:[%s246 + $0x100] sm:$0xff] %v1229
        %1294 = vst [vmem:[%s246 + $0x108] sm:$0xff] %v1230
        %1295 = vst [vmem:[%s246 + $0x110] sm:$0xff] %v1231
        %1296 = vst [vmem:[%s246 + $0x118] sm:$0xff] %v1232
        %1297 = vst [vmem:[%s246 + $0x120] sm:$0xff] %v1233
        %1298 = vst [vmem:[%s246 + $0x128] sm:$0xff] %v1234
        %1299 = vst [vmem:[%s246 + $0x130] sm:$0xff] %v1235
        %1300 = vst [vmem:[%s246 + $0x138] sm:$0xff] %v1236
        %1301 = vst [vmem:[%s246 + $0x140] sm:$0xff] %v1237
        %1302 = vst [vmem:[%s246 + $0x148] sm:$0xff] %v1238
        %1303 = vst [vmem:[%s246 + $0x150] sm:$0xff] %v1239
        %1304 = vst [vmem:[%s246 + $0x158] sm:$0xff] %v1240
        %1305 = vst [vmem:[%s246 + $0x160] sm:$0xff] %v1241
        %1306 = vst [vmem:[%s246 + $0x168] sm:$0xff] %v1242
        %1307 = vst [vmem:[%s246 + $0x170] sm:$0xff] %v1243
        %1308 = vst [vmem:[%s246 + $0x178] sm:$0xff] %v1244
        %1309 = vst [vmem:[%s246 + $0x180] sm:$0xff] %v1245
        %1310 = vst [vmem:[%s246 + $0x188] sm:$0xff] %v1246
        %1311 = vst [vmem:[%s246 + $0x190] sm:$0xff] %v1247
        %1312 = vst [vmem:[%s246 + $0x198] sm:$0xff] %v1248
        %1313 = vst [vmem:[%s246 + $0x1a0] sm:$0xff] %v1249
        %1314 = vst [vmem:[%s246 + $0x1a8] sm:$0xff] %v1250
        %1315 = vst [vmem:[%s246 + $0x1b0] sm:$0xff] %v1251
        %1316 = vst [vmem:[%s246 + $0x1b8] sm:$0xff] %v1252
        %1317 = vst [vmem:[%s246 + $0x1c0] sm:$0xff] %v1253
        %1318 = vst [vmem:[%s246 + $0x1c8] sm:$0xff] %v1254
        %1319 = vst [vmem:[%s246 + $0x1d0] sm:$0xff] %v1255
        %1320 = vst [vmem:[%s246 + $0x1d8] sm:$0xff] %v1256
        %1321 = vst [vmem:[%s246 + $0x1e0] sm:$0xff] %v1257
        %1322 = vst [vmem:[%s246 + $0x1e8] sm:$0xff] %v1258
        %1323 = vst [vmem:[%s246 + $0x1f0] sm:$0xff] %v1259
        %1324 = vst [vmem:[%s246 + $0x1f8] sm:$0xff] %v1260
      $region40: #{upsample_block.1} parent=31 // pred_fallthru
        _
      %s1325 = smul.u32 64, %s20
      %p1326 = scmp.lt.s32.totalorder %s19, 3
      %s1327 = scalar_select %p1326, %s19, 3
      %p1328 = scmp.lt.s32.totalorder %s1325, 63
      %s1329 = scalar_select %p1328, %s1325, 63
      %s1330 = smul.addr %s1327, 64
      %s1331 = sadd.s32 %s1329, %s1330
      %s1332 = smul.addr %s1331, 8
      %s1333 = scalar_lea.vmem %s3, %s1332
      // Predicated region
      $region41: #{upsample_block.1} parent=31 // pred_check
        %p1334 = pneg %p130
      $region42: #{upsample_block.1} parent=31 // pred_check_branch
        %1336 = sbr.rel (%p1334) target = $region44
      $region43: #{upsample_block.1} parent=31 // pred_region
        %s1337 = smul.u32 64, %s20
      $region44: #{upsample_block.1} parent=31 // pred_fallthru
        _
    $region32: #{upsample_block.1} parent=5 // pred_fallthru
      _
    %p1338 = scmp.le.s32.totalorder 2, %s9
    // Predicated region
    $region45: #{upsample_block.1} parent=5 // pred_check
      %p1339 = pneg %p1338
    $region46: #{upsample_block.1} parent=5 // pred_check_branch
      %1341 = sbr.rel (%p1339) target = $region48
    $region47: #{upsample_block.1} parent=5 // pred_region
      %s1342 = ssub.s32 %s9, 2
      // Predicated region
      $region49: #{upsample_block.1} parent=47 // pred_check
        %p1343 = pneg %p136
      $region50: #{upsample_block.1} parent=47 // pred_check_branch
        %1345 = sbr.rel (%p1343) target = $region52
      $region51: #{upsample_block.1} parent=47 // pred_region
        %s1346 = smul.u32 64, %s23
        %p1347 = scmp.lt.s32.totalorder %s22, 3
        %s1348 = scalar_select %p1347, %s22, 3
        %p1349 = scmp.lt.s32.totalorder %s1346, 63
        %s1350 = scalar_select %p1349, %s1346, 63
        %s1351 = smul.addr %s1348, 64
        %s1352 = sadd.s32 %s1350, %s1351
        %s1353 = smul.addr %s1352, 8
        %s1354 = scalar_lea.vmem %s3, %s1353
      $region52: #{upsample_block.1} parent=47 // pred_fallthru
        _
    $region48: #{upsample_block.1} parent=5 // pred_fallthru
      _
  $region6: #{upsample_block.1} parent=0 // loop_footer
    %s13 = sadd.s32 1, %s9
  $region7: #{upsample_block.1} parent=0 // loop_footer_branch
    %8 = sbr.rel target = $region3
  $region8: #{upsample_block.1} parent=0 // loop_exit
    _

</llo_original>
